<compile_context>
chip_gen: v7x
topology: tpu7x:2x2x1
jax: 0.10.0
libtpu: 0.0.40
codegen_flags: <defaults>
</compile_context>

<pallas_src>
import functools

import jax
import jax.numpy as jnp
from jax import lax
from jax.experimental import pallas as pl
from jax.experimental.pallas import tpu as pltpu

BN_EPS = 1e-5
NORM_EPS = 1e-12


# ---------------------------------------------------------------------------
# Generation-aware VMEM budget + tile selection.
# ---------------------------------------------------------------------------
def _vmem_limit_bytes():
    """Scoped-VMEM request sized to the chip generation."""
    cap = 128 * 1024 * 1024
    try:
        cap = int(pltpu.get_tpu_info().vmem_capacity_bytes)
    except Exception:
        pass
    if cap <= 64 * 1024 * 1024:
        # v7x: 64 MiB physical per TC -> leave headroom for double-buffers
        # and internal scratch.
        return 48 * 1024 * 1024
    # v5e / v6e: 128 MiB physical.
    return 100 * 1024 * 1024


def _encoder_tiles(M, K, D, budget):
    """Pick (tm, tk) for Kernel A from a VMEM budget."""
    m_cands = [c for c in (1024, 512, 256, 128, 64, 32, 16, 8)
               if c <= M and M % c == 0]
    if not m_cands:
        # TODO(synk): M not a multiple of 8 -> single full-M tile (only OK for
        # small M); real WSI batches (B*N) are multiples of 8.
        m_cands = [M]
    # Prefer >= 2 M tiles so both v7x TensorCores get work.
    pref = [c for c in m_cands if M // c >= 2] or m_cands
    k_cands = [c for c in (2048, 1024, 512, 256, 128)
               if c <= K and K % c == 0] or [K]
    limit = int(budget * 0.75)
    for tm in pref:
        for tk in k_cands:
            vmem = (2 * tm * tk * 4        # f32 x tile, double-buffered
                    + 2 * tk * D * 2       # bf16 backbone-weight tile, 2 bufs
                    + 2 * D * D * 2        # bf16 projector weight
                    + 2 * tm * D * 2       # bf16 z output tile
                    + tm * D * 4           # f32 accumulator scratch
                    + 6 * D * 4)           # biases / BN partials
            if vmem <= limit:
                return tm, tk
    return pref[-1], k_cands[-1]


def _bag_tiles(B, N, D, F, budget):
    """Pick (tb, tn) = (bags per step, instance-chunk length) for Kernel B."""
    n_cands = [c for c in (128, 64, 32, 16, 8) if c <= N and N % c == 0]
    if not n_cands:
        # TODO(synk): n_inst not a multiple of 8 -> full-N chunk (layout copy
        # risk only matters for large N).
        n_cands = [N]
    b_cands = [c for c in (256, 128, 64, 32, 16, 8) if c <= B and B % c == 0]
    if not b_cands:
        b_cands = [B]
    fixed = (2 * D * D * 2 + 2 * D * F * 2    # head weights (bf16), 2 bufs
             + 2 * 4 * D * 4 + 2 * F * 4)     # small affine / bias blocks
    limit = int(budget * 0.75)
    for tb in b_cands:
        for tn in n_cands:
            vmem = (fixed
                    + 2 * tb * tn * D * 2     # bf16 z chunk, double-buffered
                    + tb * D * 4              # f32 bag-sum scratch
                    + 2 * tb * F * 4)         # f32 output tile
            if vmem <= limit:
                return tb, tn
    return b_cands[-1], n_cands[-1]


# ---------------------------------------------------------------------------
# Kernel A: backbone-stub GEMM (K reduction) + Projector linear
#           + partial BatchNorm1d batch statistics.
# ---------------------------------------------------------------------------
def encoder_kernel(x_ref, wb_ref, w1_ref, bias_ref, z_ref, stats_ref, acc_ref):
    k = pl.program_id(1)

    @pl.when(k == 0)
    def _():
        acc_ref[...] = jnp.zeros_like(acc_ref)

    # Backbone stub GEMM: f32 x is cast to bf16 per tile (VPU work hidden
    # under the MXU) so the wrapper never does a standalone HBM cast pass.
    # TODO(synk): real backbone is torch.hub DINOv2 ViT-B/14 (frozen); replaced
    # by a deterministic frozen linear feature extractor of the same output dim.
    acc_ref[...] += jnp.dot(
        x_ref[...].astype(jnp.bfloat16), wb_ref[...],
        preferred_element_type=jnp.float32)

    @pl.when(k == pl.num_programs(1) - 1)
    def _():
        bb = bias_ref[0:1, :]              # backbone-stub bias  (1, D)
        b1 = bias_ref[1:2, :]              # projector bias      (1, D)
        h = acc_ref[...] + bb              # (tm, D) f32
        # finetune_layer.lin (Projector linear): bf16 MXU in / f32 acc.
        z = jnp.dot(h.astype(jnp.bfloat16), w1_ref[...],
                    preferred_element_type=jnp.float32) + b1
        # z makes the HBM round trip in bf16; BN statistics stay in f32.
        z_ref[...] = z.astype(jnp.bfloat16)
        # Partial BatchNorm1d (train-mode) statistics for this M tile,
        # written with direct stores (no concat temp on the reduction tail).
        stats_ref[0, 0:1, :] = jnp.sum(z, axis=0, keepdims=True)
        stats_ref[0, 1:2, :] = jnp.sum(z * z, axis=0, keepdims=True)


def encoder(x_flat, wb, w1, bias_a, *, tm, tk):
    M, K = x_flat.shape
    D = w1.shape[1]
    m_tiles = M // tm
    k_tiles = K // tk
    # TODO(synk): on v7x, if DMA is still exposed, add pipeline_mode=
    # pl.Buffered(3) on the x / wb specs (smaller tiles -> more K steps).
    z, stats = pl.pallas_call(
        encoder_kernel,
        out_shape=(
            jax.ShapeDtypeStruct((M, D), jnp.bfloat16),
            jax.ShapeDtypeStruct((m_tiles, 2, D), jnp.float32),
        ),
        grid_spec=pltpu.PrefetchScalarGridSpec(
            num_scalar_prefetch=0,
            grid=(m_tiles, k_tiles),
            in_specs=[
                pl.BlockSpec((tm, tk), lambda m, k: (m, k)),       # x (f32)
                pl.BlockSpec((tk, D), lambda m, k: (k, 0)),        # backbone W
                pl.BlockSpec((D, D), lambda m, k: (0, 0)),         # projector W
                pl.BlockSpec((2, D), lambda m, k: (0, 0)),         # [bb ; b1]
            ],
            out_specs=[
                pl.BlockSpec((tm, D), lambda m, k: (m, 0)),        # z (bf16)
                pl.BlockSpec((1, 2, D), lambda m, k: (m, 0, 0)),   # BN partials
            ],
            scratch_shapes=[pltpu.VMEM((tm, D), jnp.float32)],
        ),
        compiler_params=pltpu.CompilerParams(
            dimension_semantics=("parallel", "arbitrary"),
            vmem_limit_bytes=_vmem_limit_bytes(),
        ),
    )(x_flat, wb, w1, bias_a)
    return z, stats


# ---------------------------------------------------------------------------
# Kernel B: streamed per-bag instance reduction (BN-apply + ReLU + sum),
#           then mean pool + MLP head + F.normalize(dim=1) in the finalize.
# ---------------------------------------------------------------------------
def bag_head_kernel(z_ref, aff_ref, w2_ref, w3_ref, b3_ref, o_ref, acc_ref,
                    *, inv_n):
    i = pl.program_id(1)

    @pl.when(i == 0)
    def _():
        acc_ref[...] = jnp.zeros_like(acc_ref)

    # Folded BatchNorm affine: scale = gamma*inv_std, shift = beta - mean*scale.
    scale = aff_ref[0:1, :][None]                      # (1, 1, D)
    shift = aff_ref[1:2, :][None]                      # (1, 1, D)
    z = z_ref[...].astype(jnp.float32)                 # (tb, tn, D) bf16 -> f32
    inst = jnp.maximum(z * scale + shift, 0.0)         # BN + ReLU per instance
    acc_ref[...] += jnp.sum(inst, axis=1)              # per-bag partial sum

    @pl.when(i == pl.num_programs(1) - 1)
    def _():
        # Set-model stub: permutation-invariant mean pool (num_outputs=1).
        # TODO(synk): SetTransformer source not provided with the module.
        bag = acc_ref[...] * inv_n                      # (tb, D)
        b2 = aff_ref[2:3, :]
        # head: Linear -> ReLU -> Linear (bf16 MXU inputs, f32 accumulation)
        h2 = jnp.maximum(
            jnp.dot(bag.astype(jnp.bfloat16), w2_ref[...],
                    preferred_element_type=jnp.float32) + b2, 0.0)
        y = jnp.dot(h2.astype(jnp.bfloat16), w3_ref[...],
                    preferred_element_type=jnp.float32) + b3_ref[...]
        # F.normalize(y, dim=1): y / max(||y||_2, eps)   (rsqrt -> EUP)
        ssq = jnp.sum(y * y, axis=1, keepdims=True)
        o_ref[...] = y * lax.rsqrt(jnp.maximum(ssq, NORM_EPS * NORM_EPS))


def bag_head(z3, aff, w2, w3, b3, *, n_inst, tb, tn):
    B, N, D = z3.shape
    F = w3.shape[1]
    kernel = functools.partial(bag_head_kernel, inv_n=1.0 / float(n_inst))
    return pl.pallas_call(
        kernel,
        out_shape=jax.ShapeDtypeStruct((B, F), jnp.float32),
        grid_spec=pltpu.PrefetchScalarGridSpec(
            num_scalar_prefetch=0,
            grid=(B // tb, N // tn),
            in_specs=[
                pl.BlockSpec((tb, tn, D), lambda b, i: (b, i, 0)),  # bf16 z chunk
                pl.BlockSpec((3, D), lambda b, i: (0, 0)),          # [scale;shift;b2]
                pl.BlockSpec((D, D), lambda b, i: (0, 0)),          # head W2
                pl.BlockSpec((D, F), lambda b, i: (0, 0)),          # head W3
                pl.BlockSpec((1, F), lambda b, i: (0, 0)),          # head b3
            ],
            out_specs=pl.BlockSpec((tb, F), lambda b, i: (b, 0)),
            scratch_shapes=[pltpu.VMEM((tb, D), jnp.float32)],
        ),
        compiler_params=pltpu.CompilerParams(
            dimension_semantics=("parallel", "arbitrary"),
            vmem_limit_bytes=_vmem_limit_bytes(),
        ),
    )(z3, aff, w2, w3, b3)


# ---------------------------------------------------------------------------
# Full forward
# ---------------------------------------------------------------------------
def supcon_wsi_forward(x, params):
    B, N, C, H, W = x.shape
    M = B * N
    K = C * H * W
    D = params["w1"].shape[1]

    # x.view(-1, C,H,W) + per-instance flatten, kept in f32 (the bf16 cast
    # happens per tile inside Kernel A, so there is no extra HBM cast pass).
    x_flat = x.reshape(M, K)

    # Guard: pad the contraction dim to a multiple of 256 so the backbone
    # weight always gets a VMEM-sized (tk, D) tile (never the full (K, D)).
    wb = params["wb"]
    k_pad = (-K) % 256
    if k_pad:
        x_flat = jnp.pad(x_flat, ((0, 0), (0, k_pad)))
        wb = jnp.pad(wb, ((0, k_pad), (0, 0)))

    budget = _vmem_limit_bytes()
    tm, tk = _encoder_tiles(M, K + k_pad, D, budget)

    z, stats = encoder(x_flat, wb, params["w1"], params["bias_a"],
                       tm=tm, tk=tk)                   # z: (M, D) bf16

    # Global BatchNorm1d training statistics: tiny jnp reduction over the
    # per-tile partial sums, then fold gamma/beta into one affine so Kernel B
    # does a single multiply-add per element.
    # TODO(synk): running_mean/var are never updated (train-mode stats only);
    # E[z^2]-E[z]^2 in f32 is acceptable for BN-scale activations.
    ssum = jnp.sum(stats[:, 0, :], axis=0)
    ssq = jnp.sum(stats[:, 1, :], axis=0)
    mean = ssum / M
    var = ssq / M - mean * mean
    inv_std = lax.rsqrt(var + BN_EPS)
    gamma, beta, b2 = params["gbd"][0], params["gbd"][1], params["gbd"][2]
    scale = gamma * inv_std
    shift = beta - mean * scale
    aff = jnp.stack([scale, shift, b2], axis=0)        # (3, D) f32

    # (M, D) -> (B, N, D): row-major metadata reshape, no HBM copy.
    z3 = z.reshape(B, N, D)

    feat_dim = params["w3"].shape[1]
    tb, tn = _bag_tiles(B, N, D, feat_dim, budget)
    feat = bag_head(z3, aff, params["w2"], params["w3"], params["b3"],
                    n_inst=N, tb=tb, tn=tn)            # (B, feat_dim)
    return feat                                        # unit-L2 rows


def init_params(key, in_dim, dim, feat_dim):
    ks = jax.random.split(key, 4)
    s = 0.02
    return {
        # backbone stub (frozen) — bf16 weights halve HBM traffic / VMEM.
        # TODO(synk): on v7x this frozen weight could be fp8 (int8 on v5e/v6e).
        "wb": (s * jax.random.normal(ks[0], (in_dim, dim), jnp.float32)
               ).astype(jnp.bfloat16),
        # finetune_layer (Projector) Linear(dim, dim)
        "w1": (s * jax.random.normal(ks[1], (dim, dim), jnp.float32)
               ).astype(jnp.bfloat16),
        # packed [backbone bias ; projector bias]  (f32)
        "bias_a": jnp.zeros((2, dim), jnp.float32),
        # packed [BN gamma ; BN beta ; head first bias]  (f32)
        "gbd": jnp.concatenate(
            [jnp.ones((1, dim), jnp.float32),
             jnp.zeros((1, dim), jnp.float32),
             jnp.zeros((1, dim), jnp.float32)], axis=0),
        # head: Linear(dim, dim) -> ReLU -> Linear(dim, feat_dim)
        "w2": (s * jax.random.normal(ks[2], (dim, dim), jnp.float32)
               ).astype(jnp.bfloat16),
        "w3": (s * jax.random.normal(ks[3], (dim, feat_dim), jnp.float32)
               ).astype(jnp.bfloat16),
        "b3": jnp.zeros((1, feat_dim), jnp.float32),
    }


if __name__ == "__main__":
    # Small shapes consistent with the forward: (batch, n_instances, C, H, W)
    B, N, C, H, W = 2, 8, 4, 16, 16
    D = 128        # stands in for dim_in = 768
    FEAT = 128     # stands in for feat_dim = 768

    key = jax.random.PRNGKey(0)
    kx, kp = jax.random.split(key)
    x = jax.random.normal(kx, (B, N, C, H, W), jnp.float32)
    params = init_params(kp, C * H * W, D, FEAT)

    fwd = jax.jit(supcon_wsi_forward)
    feat = jax.block_until_ready(fwd(x, params))

    assert feat.shape == (B, FEAT)
    # rows should be L2-normalized
    norms = jnp.linalg.norm(feat, axis=1)
    assert bool(jnp.all(jnp.abs(norms - 1.0) < 1e-3))
    print("KERNEL_OK")
</pallas_src>

<mosaic_0001>
module attributes {stable_mosaic.version = 11 : i64} {
  func.func @encoder_kernel(%arg0: i32, %arg1: i32, %arg2: memref<8x1024xf32, #tpu.memory_space<vmem>>, %arg3: memref<1024x128xbf16, #tpu.memory_space<vmem>>, %arg4: memref<128x128xbf16, #tpu.memory_space<vmem>>, %arg5: memref<2x128xf32, #tpu.memory_space<vmem>>, %arg6: memref<8x128xbf16, #tpu.memory_space<vmem>>, %arg7: memref<1x2x128xf32, #tpu.memory_space<vmem>>, %arg8: memref<8x128xf32, #tpu.memory_space<vmem>>) attributes {dimension_semantics = [#tpu.dimension_semantics<parallel>, #tpu.dimension_semantics<arbitrary>], iteration_bounds = array<i64: 2, 1>, scalar_prefetch = 0 : i64, scratch_operands = 1 : i64, tpu.core_type = #tpu.core_type<tc>, window_params = [{transform_indices = @transform_0, window_bounds = array<i64: 8, 1024>}, {transform_indices = @transform_1, window_bounds = array<i64: 1024, 128>}, {pipeline_mode = #tpu.pipeline_mode<synchronous>, transform_indices = @transform_2, window_bounds = array<i64: 128, 128>}, {pipeline_mode = #tpu.pipeline_mode<synchronous>, transform_indices = @transform_3, window_bounds = array<i64: 2, 128>}, {transform_indices = @transform_4, window_bounds = array<i64: 8, 128>}, {transform_indices = @transform_5, window_bounds = array<i64: 1, 2, 128>}]} {
    %c0_i32 = arith.constant 0 : i32
    %0 = arith.cmpi eq, %arg1, %c0_i32 : i32
    %1 = arith.extui %0 : i1 to i32
    %c0_i32_0 = arith.constant 0 : i32
    %2 = arith.cmpi ne, %1, %c0_i32_0 : i32
    scf.if %2 {
      %cst_10 = arith.constant 0.000000e+00 : f32
      %13 = vector.broadcast %cst_10 : f32 to vector<8x128xf32>
      %c0_11 = arith.constant 0 : index
      %c0_12 = arith.constant 0 : index
      %14 = vector.load %arg8[%c0_11, %c0_12] : memref<8x128xf32, #tpu.memory_space<vmem>>, vector<8x128xf32>
      tpu.vector_store %arg8[%c0_11, %c0_12], %13 {strides = array<i32>} : memref<8x128xf32, #tpu.memory_space<vmem>>, vector<8x128xf32>,
    } else {
    }
    %c0 = arith.constant 0 : index
    %c0_1 = arith.constant 0 : index
    %3 = vector.load %arg8[%c0, %c0_1] : memref<8x128xf32, #tpu.memory_space<vmem>>, vector<8x128xf32>
    %c0_2 = arith.constant 0 : index
    %c0_3 = arith.constant 0 : index
    %4 = vector.load %arg2[%c0_2, %c0_3] : memref<8x1024xf32, #tpu.memory_space<vmem>>, vector<8x1024xf32>
    %5 = arith.truncf %4 : vector<8x1024xf32> to vector<8x1024xbf16>
    %c0_4 = arith.constant 0 : index
    %c0_5 = arith.constant 0 : index
    %6 = vector.load %arg3[%c0_4, %c0_5] : memref<1024x128xbf16, #tpu.memory_space<vmem>>, vector<1024x128xbf16>
    %cst = arith.constant dense<0.000000e+00> : vector<8x128xf32>
    %7 = tpu.matmul %5, %6, %cst {dimension_numbers = #tpu.dot_dimension_numbers<[1], [0], [0], [1], [0, 0, 1, 1], [], []>} : vector<8x1024xbf16>, vector<1024x128xbf16>, vector<8x128xf32> -> vector<8x128xf32>
    %8 = arith.addf %3, %7 : vector<8x128xf32>
    %c0_6 = arith.constant 0 : index
    %c0_7 = arith.constant 0 : index
    %9 = vector.load %arg8[%c0_6, %c0_7] : memref<8x128xf32, #tpu.memory_space<vmem>>, vector<8x128xf32>
    tpu.vector_store %arg8[%c0_6, %c0_7], %8 {strides = array<i32>} : memref<8x128xf32, #tpu.memory_space<vmem>>, vector<8x128xf32>,
    %c0_i32_8 = arith.constant 0 : i32
    %10 = arith.cmpi eq, %arg1, %c0_i32_8 : i32
    %11 = arith.extui %10 : i1 to i32
    %c0_i32_9 = arith.constant 0 : i32
    %12 = arith.cmpi ne, %11, %c0_i32_9 : i32
    scf.if %12 {
      %c0_10 = arith.constant 0 : index
      %c0_11 = arith.constant 0 : index
      %13 = vector.load %arg5[%c0_10, %c0_11] : memref<2x128xf32, #tpu.memory_space<vmem>>, vector<1x128xf32>
      %c1 = arith.constant 1 : index
      %c0_12 = arith.constant 0 : index
      %14 = vector.load %arg5[%c1, %c0_12] : memref<2x128xf32, #tpu.memory_space<vmem>>, vector<1x128xf32>
      %c0_13 = arith.constant 0 : index
      %c0_14 = arith.constant 0 : index
      %15 = vector.load %arg8[%c0_13, %c0_14] : memref<8x128xf32, #tpu.memory_space<vmem>>, vector<8x128xf32>
      %16 = vector.broadcast %13 : vector<1x128xf32> to vector<8x128xf32>
      %17 = arith.addf %15, %16 : vector<8x128xf32>
      %18 = arith.truncf %17 : vector<8x128xf32> to vector<8x128xbf16>
      %c0_15 = arith.constant 0 : index
      %c0_16 = arith.constant 0 : index
      %19 = vector.load %arg4[%c0_15, %c0_16] : memref<128x128xbf16, #tpu.memory_space<vmem>>, vector<128x128xbf16>
      %cst_17 = arith.constant dense<0.000000e+00> : vector<8x128xf32>
      %20 = tpu.matmul %18, %19, %cst_17 {dimension_numbers = #tpu.dot_dimension_numbers<[1], [0], [0], [1], [0, 0, 1, 1], [], []>} : vector<8x128xbf16>, vector<128x128xbf16>, vector<8x128xf32> -> vector<8x128xf32>
      %21 = vector.broadcast %14 : vector<1x128xf32> to vector<8x128xf32>
      %22 = arith.addf %20, %21 : vector<8x128xf32>
      %23 = arith.truncf %22 : vector<8x128xf32> to vector<8x128xbf16>
      %c0_18 = arith.constant 0 : index
      %c0_19 = arith.constant 0 : index
      %24 = vector.load %arg6[%c0_18, %c0_19] : memref<8x128xbf16, #tpu.memory_space<vmem>>, vector<8x128xbf16>
      tpu.vector_store %arg6[%c0_18, %c0_19], %23 {strides = array<i32>} : memref<8x128xbf16, #tpu.memory_space<vmem>>, vector<8x128xbf16>,
      %cst_20 = arith.constant dense<0.000000e+00> : vector<128xf32>
      %25 = vector.multi_reduction <add>, %22, %cst_20 [0] : vector<8x128xf32> to vector<128xf32>
      %26 = vector.shape_cast %25 : vector<128xf32> to vector<1x128xf32>
      %c0_21 = arith.constant 0 : index
      %c0_22 = arith.constant 0 : index
      %c0_23 = arith.constant 0 : index
      %27 = vector.load %arg7[%c0_21, %c0_22, %c0_23] : memref<1x2x128xf32, #tpu.memory_space<vmem>>, vector<1x1x128xf32>
      %28 = vector.shape_cast %27 : vector<1x1x128xf32> to vector<1x128xf32>
      %29 = vector.shape_cast %26 : vector<1x128xf32> to vector<1x1x128xf32>
      tpu.vector_store %arg7[%c0_21, %c0_22, %c0_23], %29 {strides = array<i32>} : memref<1x2x128xf32, #tpu.memory_space<vmem>>, vector<1x1x128xf32>,
      %30 = arith.mulf %22, %22 : vector<8x128xf32>
      %cst_24 = arith.constant dense<0.000000e+00> : vector<128xf32>
      %31 = vector.multi_reduction <add>, %30, %cst_24 [0] : vector<8x128xf32> to vector<128xf32>
      %32 = vector.shape_cast %31 : vector<128xf32> to vector<1x128xf32>
      %c0_25 = arith.constant 0 : index
      %c1_26 = arith.constant 1 : index
      %c0_27 = arith.constant 0 : index
      %33 = vector.load %arg7[%c0_25, %c1_26, %c0_27] : memref<1x2x128xf32, #tpu.memory_space<vmem>>, vector<1x1x128xf32>
      %34 = vector.shape_cast %33 : vector<1x1x128xf32> to vector<1x128xf32>
      %35 = vector.shape_cast %32 : vector<1x128xf32> to vector<1x1x128xf32>
      tpu.vector_store %arg7[%c0_25, %c1_26, %c0_27], %35 {strides = array<i32>} : memref<1x2x128xf32, #tpu.memory_space<vmem>>, vector<1x1x128xf32>,
    } else {
    }
    return
  }
  func.func @transform_0(%arg0: i32, %arg1: i32) -> (i32, i32) {
    %c0_i32 = arith.constant 0 : i32
    return %arg0, %arg1 : i32, i32
  }
  func.func @transform_1(%arg0: i32, %arg1: i32) -> (i32, i32) {
    %c0_i32 = arith.constant 0 : i32
    %c0_i32_0 = arith.constant 0 : i32
    return %arg1, %c0_i32 : i32, i32
  }
  func.func @transform_2(%arg0: i32, %arg1: i32) -> (i32, i32) {
    %c0_i32 = arith.constant 0 : i32
    %c0_i32_0 = arith.constant 0 : i32
    %c0_i32_1 = arith.constant 0 : i32
    return %c0_i32, %c0_i32_0 : i32, i32
  }
  func.func @transform_3(%arg0: i32, %arg1: i32) -> (i32, i32) {
    %c0_i32 = arith.constant 0 : i32
    %c0_i32_0 = arith.constant 0 : i32
    %c0_i32_1 = arith.constant 0 : i32
    return %c0_i32, %c0_i32_0 : i32, i32
  }
  func.func @transform_4(%arg0: i32, %arg1: i32) -> (i32, i32) {
    %c0_i32 = arith.constant 0 : i32
    %c0_i32_0 = arith.constant 0 : i32
    return %arg0, %c0_i32 : i32, i32
  }
  func.func @transform_5(%arg0: i32, %arg1: i32) -> (i32, i32, i32) {
    %c0_i32 = arith.constant 0 : i32
    %c0_i32_0 = arith.constant 0 : i32
    %c0_i32_1 = arith.constant 0 : i32
    return %arg0, %c0_i32, %c0_i32_0 : i32, i32, i32
  }
}

module attributes {stable_mosaic.version = 11 : i64} {
  func.func @bag_head_kernel(%arg0: i32, %arg1: i32, %arg2: memref<2x8x128xbf16, #tpu.memory_space<vmem>>, %arg3: memref<3x128xf32, #tpu.memory_space<vmem>>, %arg4: memref<128x128xbf16, #tpu.memory_space<vmem>>, %arg5: memref<128x128xbf16, #tpu.memory_space<vmem>>, %arg6: memref<1x128xf32, #tpu.memory_space<vmem>>, %arg7: memref<2x128xf32, #tpu.memory_space<vmem>>, %arg8: memref<2x128xf32, #tpu.memory_space<vmem>>) attributes {dimension_semantics = [#tpu.dimension_semantics<parallel>, #tpu.dimension_semantics<arbitrary>], iteration_bounds = array<i64: 1, 1>, scalar_prefetch = 0 : i64, scratch_operands = 1 : i64, tpu.core_type = #tpu.core_type<tc>, window_params = [{transform_indices = @transform_0, window_bounds = array<i64: 2, 8, 128>}, {pipeline_mode = #tpu.pipeline_mode<synchronous>, transform_indices = @transform_1, window_bounds = array<i64: 3, 128>}, {pipeline_mode = #tpu.pipeline_mode<synchronous>, transform_indices = @transform_2, window_bounds = array<i64: 128, 128>}, {pipeline_mode = #tpu.pipeline_mode<synchronous>, transform_indices = @transform_3, window_bounds = array<i64: 128, 128>}, {pipeline_mode = #tpu.pipeline_mode<synchronous>, transform_indices = @transform_4, window_bounds = array<i64: 1, 128>}, {transform_indices = @transform_5, window_bounds = array<i64: 2, 128>}]} {
    %c0_i32 = arith.constant 0 : i32
    %0 = arith.cmpi eq, %arg1, %c0_i32 : i32
    %1 = arith.extui %0 : i1 to i32
    %c0_i32_0 = arith.constant 0 : i32
    %2 = arith.cmpi ne, %1, %c0_i32_0 : i32
    scf.if %2 {
      %cst_13 = arith.constant 0.000000e+00 : f32
      %22 = vector.broadcast %cst_13 : f32 to vector<2x128xf32>
      %c0_14 = arith.constant 0 : index
      %c0_15 = arith.constant 0 : index
      %23 = vector.load %arg8[%c0_14, %c0_15] : memref<2x128xf32, #tpu.memory_space<vmem>>, vector<2x128xf32>
      tpu.vector_store %arg8[%c0_14, %c0_15], %22 {strides = array<i32>} : memref<2x128xf32, #tpu.memory_space<vmem>>, vector<2x128xf32>,
    } else {
    }
    %c0 = arith.constant 0 : index
    %c0_1 = arith.constant 0 : index
    %3 = vector.load %arg3[%c0, %c0_1] : memref<3x128xf32, #tpu.memory_space<vmem>>, vector<1x128xf32>
    %4 = vector.shape_cast %3 : vector<1x128xf32> to vector<1x1x128xf32>
    %c1 = arith.constant 1 : index
    %c0_2 = arith.constant 0 : index
    %5 = vector.load %arg3[%c1, %c0_2] : memref<3x128xf32, #tpu.memory_space<vmem>>, vector<1x128xf32>
    %6 = vector.shape_cast %5 : vector<1x128xf32> to vector<1x1x128xf32>
    %c0_3 = arith.constant 0 : index
    %c0_4 = arith.constant 0 : index
    %c0_5 = arith.constant 0 : index
    %7 = vector.load %arg2[%c0_3, %c0_4, %c0_5] : memref<2x8x128xbf16, #tpu.memory_space<vmem>>, vector<2x8x128xbf16>
    %8 = arith.extf %7 : vector<2x8x128xbf16> to vector<2x8x128xf32>
    %9 = vector.broadcast %4 : vector<1x1x128xf32> to vector<2x8x128xf32>
    %10 = arith.mulf %8, %9 : vector<2x8x128xf32>
    %11 = vector.broadcast %6 : vector<1x1x128xf32> to vector<2x8x128xf32>
    %12 = arith.addf %10, %11 : vector<2x8x128xf32>
    %cst = arith.constant 0.000000e+00 : f32
    %13 = vector.broadcast %cst : f32 to vector<2x8x128xf32>
    %14 = arith.maximumf %12, %13 : vector<2x8x128xf32>
    %c0_6 = arith.constant 0 : index
    %c0_7 = arith.constant 0 : index
    %15 = vector.load %arg8[%c0_6, %c0_7] : memref<2x128xf32, #tpu.memory_space<vmem>>, vector<2x128xf32>
    %cst_8 = arith.constant dense<0.000000e+00> : vector<2x128xf32>
    %16 = vector.multi_reduction <add>, %14, %cst_8 [1] : vector<2x8x128xf32> to vector<2x128xf32>
    %17 = arith.addf %15, %16 : vector<2x128xf32>
    %c0_9 = arith.constant 0 : index
    %c0_10 = arith.constant 0 : index
    %18 = vector.load %arg8[%c0_9, %c0_10] : memref<2x128xf32, #tpu.memory_space<vmem>>, vector<2x128xf32>
    tpu.vector_store %arg8[%c0_9, %c0_10], %17 {strides = array<i32>} : memref<2x128xf32, #tpu.memory_space<vmem>>, vector<2x128xf32>,
    %c0_i32_11 = arith.constant 0 : i32
    %19 = arith.cmpi eq, %arg1, %c0_i32_11 : i32
    %20 = arith.extui %19 : i1 to i32
    %c0_i32_12 = arith.constant 0 : i32
    %21 = arith.cmpi ne, %20, %c0_i32_12 : i32
    scf.if %21 {
      %c0_13 = arith.constant 0 : index
      %c0_14 = arith.constant 0 : index
      %22 = vector.load %arg8[%c0_13, %c0_14] : memref<2x128xf32, #tpu.memory_space<vmem>>, vector<2x128xf32>
      %cst_15 = arith.constant 1.250000e-01 : f32
      %23 = vector.broadcast %cst_15 : f32 to vector<2x128xf32>
      %24 = arith.mulf %22, %23 : vector<2x128xf32>
      %c2 = arith.constant 2 : index
      %c0_16 = arith.constant 0 : index
      %25 = vector.load %arg3[%c2, %c0_16] : memref<3x128xf32, #tpu.memory_space<vmem>>, vector<1x128xf32>
      %26 = arith.truncf %24 : vector<2x128xf32> to vector<2x128xbf16>
      %c0_17 = arith.constant 0 : index
      %c0_18 = arith.constant 0 : index
      %27 = vector.load %arg4[%c0_17, %c0_18] : memref<128x128xbf16, #tpu.memory_space<vmem>>, vector<128x128xbf16>
      %cst_19 = arith.constant dense<0.000000e+00> : vector<2x128xf32>
      %28 = tpu.matmul %26, %27, %cst_19 {dimension_numbers = #tpu.dot_dimension_numbers<[1], [0], [0], [1], [0, 0, 1, 1], [], []>} : vector<2x128xbf16>, vector<128x128xbf16>, vector<2x128xf32> -> vector<2x128xf32>
      %29 = vector.broadcast %25 : vector<1x128xf32> to vector<2x128xf32>
      %30 = arith.addf %28, %29 : vector<2x128xf32>
      %cst_20 = arith.constant 0.000000e+00 : f32
      %31 = vector.broadcast %cst_20 : f32 to vector<2x128xf32>
      %32 = arith.maximumf %30, %31 : vector<2x128xf32>
      %33 = arith.truncf %32 : vector<2x128xf32> to vector<2x128xbf16>
      %c0_21 = arith.constant 0 : index
      %c0_22 = arith.constant 0 : index
      %34 = vector.load %arg5[%c0_21, %c0_22] : memref<128x128xbf16, #tpu.memory_space<vmem>>, vector<128x128xbf16>
      %cst_23 = arith.constant dense<0.000000e+00> : vector<2x128xf32>
      %35 = tpu.matmul %33, %34, %cst_23 {dimension_numbers = #tpu.dot_dimension_numbers<[1], [0], [0], [1], [0, 0, 1, 1], [], []>} : vector<2x128xbf16>, vector<128x128xbf16>, vector<2x128xf32> -> vector<2x128xf32>
      %c0_24 = arith.constant 0 : index
      %c0_25 = arith.constant 0 : index
      %36 = vector.load %arg6[%c0_24, %c0_25] : memref<1x128xf32, #tpu.memory_space<vmem>>, vector<1x128xf32>
      %37 = vector.broadcast %36 : vector<1x128xf32> to vector<2x128xf32>
      %38 = arith.addf %35, %37 : vector<2x128xf32>
      %39 = arith.mulf %38, %38 : vector<2x128xf32>
      %cst_26 = arith.constant dense<0.000000e+00> : vector<2xf32>
      %40 = vector.multi_reduction <add>, %39, %cst_26 [1] : vector<2x128xf32> to vector<2xf32>
      %41 = vector.shape_cast %40 : vector<2xf32> to vector<2x1xf32>
      %cst_27 = arith.constant 1.000000e-24 : f32
      %42 = vector.broadcast %cst_27 : f32 to vector<2x1xf32>
      %43 = arith.maximumf %41, %42 : vector<2x1xf32>
      %44 = math.rsqrt %43 : vector<2x1xf32>
      %45 = vector.broadcast %44 : vector<2x1xf32> to vector<2x128xf32>
      %46 = arith.mulf %38, %45 : vector<2x128xf32>
      %c0_28 = arith.constant 0 : index
      %c0_29 = arith.constant 0 : index
      %47 = vector.load %arg7[%c0_28, %c0_29] : memref<2x128xf32, #tpu.memory_space<vmem>>, vector<2x128xf32>
      tpu.vector_store %arg7[%c0_28, %c0_29], %46 {strides = array<i32>} : memref<2x128xf32, #tpu.memory_space<vmem>>, vector<2x128xf32>,
    } else {
    }
    return
  }
  func.func @transform_0(%arg0: i32, %arg1: i32) -> (i32, i32, i32) {
    %c0_i32 = arith.constant 0 : i32
    %c0_i32_0 = arith.constant 0 : i32
    return %arg0, %arg1, %c0_i32 : i32, i32, i32
  }
  func.func @transform_1(%arg0: i32, %arg1: i32) -> (i32, i32) {
    %c0_i32 = arith.constant 0 : i32
    %c0_i32_0 = arith.constant 0 : i32
    %c0_i32_1 = arith.constant 0 : i32
    return %c0_i32, %c0_i32_0 : i32, i32
  }
  func.func @transform_2(%arg0: i32, %arg1: i32) -> (i32, i32) {
    %c0_i32 = arith.constant 0 : i32
    %c0_i32_0 = arith.constant 0 : i32
    %c0_i32_1 = arith.constant 0 : i32
    return %c0_i32, %c0_i32_0 : i32, i32
  }
  func.func @transform_3(%arg0: i32, %arg1: i32) -> (i32, i32) {
    %c0_i32 = arith.constant 0 : i32
    %c0_i32_0 = arith.constant 0 : i32
    %c0_i32_1 = arith.constant 0 : i32
    return %c0_i32, %c0_i32_0 : i32, i32
  }
  func.func @transform_4(%arg0: i32, %arg1: i32) -> (i32, i32) {
    %c0_i32 = arith.constant 0 : i32
    %c0_i32_0 = arith.constant 0 : i32
    %c0_i32_1 = arith.constant 0 : i32
    return %c0_i32, %c0_i32_0 : i32, i32
  }
  func.func @transform_5(%arg0: i32, %arg1: i32) -> (i32, i32) {
    %c0_i32 = arith.constant 0 : i32
    %c0_i32_0 = arith.constant 0 : i32
    return %arg0, %c0_i32 : i32, i32
  }
}

</mosaic_0001>

<llo_original>
// kernel: supcon_wsi_forward.2
$region0: #{supcon_wsi_forward.2}
  #allocation0 [shape = 'u32[]', space=smem, size = 0x4, offset = 0x4, fixed_abs, tag = 'smem constant byte address 0x4 - core index']
  #allocation1 [shape = 'u32[144,128]{1,0:T(1,128)}', space=vmem, size = 0x12000, scoped, tag = 'internal scratch']
  #allocation2 [shape = 'f32[8,128]{1,0:T(8,128)}', space=vmem, size = 0x1000, scoped, tag = 'scratch operand']
  %s0 = inlined_call_operand.hbm [shape: f32[16,1024], index: 0, kind: input, shape index: {}]
  %s1 = inlined_call_operand.hbm [shape: bf16[1024,128], index: 1, kind: input, shape index: {}]
  %s2 = inlined_call_operand.hbm [shape: bf16[128,128], index: 2, kind: input, shape index: {}]
  %s3 = inlined_call_operand.hbm [shape: f32[2,128], index: 3, kind: input, shape index: {}]
  %s4 = inlined_call_operand.hbm [shape: bf16[16,128], index: 4, kind: output, shape index: {0}]
  %s5 = inlined_call_operand.hbm [shape: f32[2,2,128], index: 5, kind: output, shape index: {1}]
  %6 = xla_tuple %s4, %s5
  %s7 = sld [smem:[#allocation0]]
  $region81: #{supcon_wsi_forward.2} parent=0
    _
  %s9 = ssub.s32 1, %s7
  %s10 = scalar_select 0, %s9, %s7
  $region1: #{supcon_wsi_forward.2} parent=0
    #allocation3 [shape = 'u8[65536]{0}', space=vmem, size = 0x10000, scoped, tag = 'input window, operand 0']
    #allocation4 [shape = 's32[2]{0}', space=sflag, size = 0x8, scoped, tag = 'scoped memory for supcon_wsi_forward.2']
    #allocation5 [shape = 's32[2]{0}', space=sflag, size = 0x8, scoped, tag = 'scoped memory for supcon_wsi_forward.2']
    #allocation6 [shape = 'u8[262144]{0}', space=vmem, size = 0x40000, scoped, tag = 'input window, operand 1, single buffered']
    #allocation7 [shape = 's32[1]{0}', space=sflag, size = 0x4, scoped, tag = 'scoped memory for supcon_wsi_forward.2']
    #allocation8 [shape = 'u8[32768]{0}', space=vmem, size = 0x8000, scoped, tag = 'input window, operand 2, single buffered']
    #allocation9 [shape = 'u8[1024]{0}', space=vmem, size = 0x400, scoped, tag = 'input window, operand 3, single buffered']
    #allocation10 [shape = 's32[1]{0}', space=sflag, size = 0x4, scoped, tag = 'scoped memory for supcon_wsi_forward.2']
    #allocation11 [shape = 'u8[4096]{0}', space=vmem, size = 0x1000, scoped, tag = 'output window, operand 0']
    #allocation12 [shape = 'u8[2048]{0}', space=vmem, size = 0x800, scoped, tag = 'output window, operand 1']
    #allocation13 [shape = 's32[2]{0}', space=sflag, size = 0x8, scoped, tag = 'scoped memory for supcon_wsi_forward.2']
    %11 = vsyncpa [#allocation4], 0
    %s12 = scalar_lea.sflag [#allocation4], 1
    %13 = vsyncpa %s12, 0
    %14 = vsyncpa [#allocation7], 0
    %15 = vsyncpa [#allocation10], 0
    %16 = vsyncpa [#allocation5], 0
    %s17 = scalar_lea.sflag [#allocation5], 1
    %18 = vsyncpa %s17, 0
    %19 = vsyncpa [#allocation13], 0
    %s20 = scalar_lea.sflag [#allocation13], 1
    %21 = vsyncpa %s20, 0
    loop: start=0, step=1, limit=4
    $region2: #{supcon_wsi_forward.2} parent=1 // loop_pre_header
      _
    $region3: #{supcon_wsi_forward.2} parent=1 // loop_header
      %s23 = sphi 0, %s27
      %p24 = scmp.ge.s32.totalorder %s23, 4
      %s30 = sphi 0, %s42
      %s31 = sphi 0, %s38
      %s32 = sphi 0, %s30
      %s33 = sphi 0, %s31
      %s34 = sphi 0, %s32
      %s35 = sphi 0, %s33
      %s47 = sphi 0, %s49
      %s50 = sphi 0, %s47
      %s51 = sphi 0, %s50
      %s67 = sphi 0, %s51
      %s73 = sphi 0, %s75
      %s76 = sphi 0, %s73
      %s77 = sphi 0, %s76
      %s93 = sphi 0, %s77
      %s97 = sphi 0, %s97
      %s99 = sphi 0, %s97
      %s100 = sphi 0, %s99
      %s114 = sphi 0, %s100
      %s118 = sphi 0, %s118
      %s120 = sphi 0, %s118
      %s121 = sphi 0, %s120
      %s135 = sphi 0, %s121
      %s141 = sphi 0, %s143
      %s144 = sphi 0, %s141
      %s145 = sphi 0, %s144
      %s161 = sphi 0, %s145
      %s167 = sphi 0, %s169
      %s170 = sphi 0, %s167
      %s171 = sphi 0, %s170
      %s187 = sphi 0, %s171
    $region4: #{supcon_wsi_forward.2} parent=1 // loop_header_branch
      %26 = sbr.rel (%p24) target = $region8
    $region5: #{supcon_wsi_forward.2} parent=1 // loop_body
      %s28 = ssub.s32 %s23, 1
      %s29 = ssub.s32 %s23, 2
      %s36 = sadd.s32 1, %s31
      %p37 = scmp.ge.s32.totalorder %s36, 1
      %s38 = scalar_select %p37, 0, %s36
      %s39 = sadd.s32 1, %s30
      %s40 = scalar_select %p37, %s39, %s30
      %p41 = scmp.ge.s32.totalorder %s40, 2
      %s42 = scalar_select %p41, 0, %s40
      %s43 = ssub.s32 %s30, %s42
      %s44 = ssub.s32 %s31, %s38
      %s45 = sor.u32 %s43, %s44
      %p46 = scmp.eq.s32.totalorder %s45, 0
      %s48 = sadd.s32 %s47, 1
      %s49 = scalar_select %p46, %s47, %s48
      %p52 = pneg %p46
      %p53 = scmp.eq.s32.totalorder %s23, 1
      %p54 = por %p52, %p53
      %p55 = scmp.ne.s32.totalorder %s47, %s50
      %p56 = scmp.eq.s32.totalorder %s23, 0
      %p57 = por %p55, %p56
      %p58 = scmp.ne.s32.totalorder %s47, %s50
      %p59 = scmp.eq.s32.totalorder %s28, 1
      %p60 = por %p58, %p59
      %p61 = scmp.ne.s32.totalorder %s50, %s51
      %p62 = scmp.eq.s32.totalorder %s28, 0
      %p63 = por %p61, %p62
      %p64 = scmp.ne.s32.totalorder %s50, %s51
      %p65 = scmp.eq.s32.totalorder %s29, 1
      %p66 = por %p64, %p65
      %p68 = scmp.ne.s32.totalorder %s51, %s67
      %p69 = scmp.eq.s32.totalorder %s29, 0
      %p70 = por %p68, %p69
      %s71 = ssub.s32 %s31, %s38
      %p72 = scmp.eq.s32.totalorder %s71, 0
      %s74 = sadd.s32 %s73, 1
      %s75 = scalar_select %p72, %s73, %s74
      %p78 = pneg %p72
      %p79 = scmp.eq.s32.totalorder %s23, 1
      %p80 = por %p78, %p79
      %p81 = scmp.ne.s32.totalorder %s73, %s76
      %p82 = scmp.eq.s32.totalorder %s23, 0
      %p83 = por %p81, %p82
      %p84 = scmp.ne.s32.totalorder %s73, %s76
      %p85 = scmp.eq.s32.totalorder %s28, 1
      %p86 = por %p84, %p85
      %p87 = scmp.ne.s32.totalorder %s76, %s77
      %p88 = scmp.eq.s32.totalorder %s28, 0
      %p89 = por %p87, %p88
      %p90 = scmp.ne.s32.totalorder %s76, %s77
      %p91 = scmp.eq.s32.totalorder %s29, 1
      %p92 = por %p90, %p91
      %p94 = scmp.ne.s32.totalorder %s77, %s93
      %p95 = scmp.eq.s32.totalorder %s29, 0
      %p96 = por %p94, %p95
      %s98 = sadd.s32 %s97, 1
      %p101 = scmp.eq.s32.totalorder %s23, 1
      %p102 = scmp.ne.s32.totalorder %s97, %s99
      %p103 = scmp.eq.s32.totalorder %s23, 0
      %p104 = por %p102, %p103
      %p105 = scmp.ne.s32.totalorder %s97, %s99
      %p106 = scmp.eq.s32.totalorder %s28, 1
      %p107 = por %p105, %p106
      %p108 = scmp.ne.s32.totalorder %s99, %s100
      %p109 = scmp.eq.s32.totalorder %s28, 0
      %p110 = por %p108, %p109
      %p111 = scmp.ne.s32.totalorder %s99, %s100
      %p112 = scmp.eq.s32.totalorder %s29, 1
      %p113 = por %p111, %p112
      %p115 = scmp.ne.s32.totalorder %s100, %s114
      %p116 = scmp.eq.s32.totalorder %s29, 0
      %p117 = por %p115, %p116
      %s119 = sadd.s32 %s118, 1
      %p122 = scmp.eq.s32.totalorder %s23, 1
      %p123 = scmp.ne.s32.totalorder %s118, %s120
      %p124 = scmp.eq.s32.totalorder %s23, 0
      %p125 = por %p123, %p124
      %p126 = scmp.ne.s32.totalorder %s118, %s120
      %p127 = scmp.eq.s32.totalorder %s28, 1
      %p128 = por %p126, %p127
      %p129 = scmp.ne.s32.totalorder %s120, %s121
      %p130 = scmp.eq.s32.totalorder %s28, 0
      %p131 = por %p129, %p130
      %p132 = scmp.ne.s32.totalorder %s120, %s121
      %p133 = scmp.eq.s32.totalorder %s29, 1
      %p134 = por %p132, %p133
      %p136 = scmp.ne.s32.totalorder %s121, %s135
      %p137 = scmp.eq.s32.totalorder %s29, 0
      %p138 = por %p136, %p137
      %s139 = ssub.s32 %s30, %s42
      %p140 = scmp.eq.s32.totalorder %s139, 0
      %s142 = sadd.s32 %s141, 1
      %s143 = scalar_select %p140, %s141, %s142
      %p146 = pneg %p140
      %p147 = scmp.eq.s32.totalorder %s23, 1
      %p148 = por %p146, %p147
      %p149 = scmp.ne.s32.totalorder %s141, %s144
      %p150 = scmp.eq.s32.totalorder %s23, 0
      %p151 = por %p149, %p150
      %p152 = scmp.ne.s32.totalorder %s141, %s144
      %p153 = scmp.eq.s32.totalorder %s28, 1
      %p154 = por %p152, %p153
      %p155 = scmp.ne.s32.totalorder %s144, %s145
      %p156 = scmp.eq.s32.totalorder %s28, 0
      %p157 = por %p155, %p156
      %p158 = scmp.ne.s32.totalorder %s144, %s145
      %p159 = scmp.eq.s32.totalorder %s29, 1
      %p160 = por %p158, %p159
      %p162 = scmp.ne.s32.totalorder %s145, %s161
      %p163 = scmp.eq.s32.totalorder %s29, 0
      %p164 = por %p162, %p163
      %s165 = ssub.s32 %s30, %s42
      %p166 = scmp.eq.s32.totalorder %s165, 0
      %s168 = sadd.s32 %s167, 1
      %s169 = scalar_select %p166, %s167, %s168
      %p172 = pneg %p166
      %p173 = scmp.eq.s32.totalorder %s23, 1
      %p174 = por %p172, %p173
      %p175 = scmp.ne.s32.totalorder %s167, %s170
      %p176 = scmp.eq.s32.totalorder %s23, 0
      %p177 = por %p175, %p176
      %p178 = scmp.ne.s32.totalorder %s167, %s170
      %p179 = scmp.eq.s32.totalorder %s28, 1
      %p180 = por %p178, %p179
      %p181 = scmp.ne.s32.totalorder %s170, %s171
      %p182 = scmp.eq.s32.totalorder %s28, 0
      %p183 = por %p181, %p182
      %p184 = scmp.ne.s32.totalorder %s170, %s171
      %p185 = scmp.eq.s32.totalorder %s29, 1
      %p186 = por %p184, %p185
      %p188 = scmp.ne.s32.totalorder %s171, %s187
      %p189 = scmp.eq.s32.totalorder %s29, 0
      %p190 = por %p188, %p189
      %p191 = scmp.le.s32.totalorder 1, %s23
      %p192 = scmp.lt.s32.totalorder %s23, 3
      %p193 = pnand %p191, %p192
      %p194 = pneg %p193
      // Predicated region
      $region9: #{supcon_wsi_forward.2} parent=5 // pred_check
        _
      $region10: #{supcon_wsi_forward.2} parent=5 // pred_check_branch
        %196 = sbr.rel (%p193) target = $region12
      $region11: #{supcon_wsi_forward.2} parent=5 // pred_region
        %s197 = ssub.s32 %s23, 1
        // Predicated region
        $region13: #{supcon_wsi_forward.2} parent=11 // pred_check
          %p198 = pneg %p89
        $region14: #{supcon_wsi_forward.2} parent=11 // pred_check_branch
          %200 = sbr.rel (%p198) target = $region16
        $region15: #{supcon_wsi_forward.2} parent=11 // pred_region
          %s201 = smul.u32 128, %s33
          %s203 = ssub.s32 8192, 8192
          %204 = vsyncadd [#allocation7], %s203
          %s205 = smul.addr %s201, 64
          %s206 = scalar_lea.hbm %s1, %s205
          %s207 = sshll.u32 [#allocation6], 4
          %s208 = int_to_ptr.vmem [resolvable:$true] %s207
          %213 = dma.hbm_to_vmem [thread:$0]  %s206, 8192, %s208, [#allocation7], 64, 64, 4
        $region16: #{supcon_wsi_forward.2} parent=11 // pred_fallthru
          _
        // Predicated region
        $region17: #{supcon_wsi_forward.2} parent=11 // pred_check
          %p214 = pneg %p110
        $region18: #{supcon_wsi_forward.2} parent=11 // pred_check_branch
          %216 = sbr.rel (%p214) target = $region20
        $region19: #{supcon_wsi_forward.2} parent=11 // pred_region
          %s218 = ssub.s32 1024, 1024
          %219 = vsyncadd [#allocation7], %s218
          %s220 = sshll.u32 [#allocation8], 4
          %s221 = int_to_ptr.vmem [resolvable:$true] %s220
          %226 = dma.hbm_to_vmem [thread:$0]  %s2, 1024, %s221, [#allocation7], 64, 64, 4
        $region20: #{supcon_wsi_forward.2} parent=11 // pred_fallthru
          _
        // Predicated region
        $region21: #{supcon_wsi_forward.2} parent=11 // pred_check
          %p227 = pneg %p131
        $region22: #{supcon_wsi_forward.2} parent=11 // pred_check_branch
          %229 = sbr.rel (%p227) target = $region24
        $region23: #{supcon_wsi_forward.2} parent=11 // pred_region
          %s231 = ssub.s32 32, 32
          %232 = vsyncadd [#allocation10], %s231
          %s234 = sshll.u32 [#allocation9], 4
          %s235 = int_to_ptr.vmem [resolvable:$true] %s234
          %237 = dma.hbm_to_vmem [thread:$0]  %s3, 32, %s235, [#allocation10]
        $region24: #{supcon_wsi_forward.2} parent=11 // pred_fallthru
          _
      $region12: #{supcon_wsi_forward.2} parent=5 // pred_fallthru
        _
      %p238 = scmp.lt.s32.totalorder %s23, 2
      // Predicated region
      $region25: #{supcon_wsi_forward.2} parent=5 // pred_check
        %p239 = pneg %p238
      $region26: #{supcon_wsi_forward.2} parent=5 // pred_check_branch
        %241 = sbr.rel (%p239) target = $region28
      $region27: #{supcon_wsi_forward.2} parent=5 // pred_region
        // Predicated region
        $region29: #{supcon_wsi_forward.2} parent=27 // pred_check
          %p242 = pneg %p57
        $region30: #{supcon_wsi_forward.2} parent=27 // pred_check_branch
          %244 = sbr.rel (%p242) target = $region32
        $region31: #{supcon_wsi_forward.2} parent=27 // pred_region
          %s245 = sand.u32 %s47, 1
          %s246 = scalar_lea.sflag [#allocation4], %s245
          %s247 = sand.u32 %s47, 1
          %s248 = smul.addr %s247, 64
          %s249 = scalar_lea.vmem [#allocation3], %s248
          %s250 = smul.u32 8, %s31
          %s252 = ssub.s32 1024, 1024
          %253 = vsyncadd %s246, %s252
          %s254 = smul.addr %s30, 8
          %s255 = sadd.s32 %s250, %s254
          %s256 = smul.addr %s255, 128
          %s257 = scalar_lea.hbm %s0, %s256
          %s259 = sshll.u32 %s249, 4
          %s260 = int_to_ptr.vmem [resolvable:$true] %s259
          %262 = dma.hbm_to_vmem [thread:$0]  %s257, 1024, %s260, %s246
        $region32: #{supcon_wsi_forward.2} parent=27 // pred_fallthru
          _
      $region28: #{supcon_wsi_forward.2} parent=5 // pred_fallthru
        _
      %p263 = scmp.le.s32.totalorder 1, %s23
      %p264 = scmp.lt.s32.totalorder %s23, 3
      %p265 = pnand %p263, %p264
      %p266 = pneg %p265
      // Predicated region
      $region33: #{supcon_wsi_forward.2} parent=5 // pred_check
        _
      $region34: #{supcon_wsi_forward.2} parent=5 // pred_check_branch
        %268 = sbr.rel (%p265) target = $region36
      $region35: #{supcon_wsi_forward.2} parent=5 // pred_region
        %s269 = ssub.s32 %s23, 1
        %s270 = sand.u32 %s50, 1
        %s271 = scalar_lea.sflag [#allocation4], %s270
        %s272 = sand.u32 %s50, 1
        %s273 = smul.addr %s272, 64
        %s274 = scalar_lea.vmem [#allocation3], %s273
        // Predicated region
        $region37: #{supcon_wsi_forward.2} parent=35 // pred_check
          %p275 = pneg %p63
        $region38: #{supcon_wsi_forward.2} parent=35 // pred_check_branch
          %277 = sbr.rel (%p275) target = $region40
        $region39: #{supcon_wsi_forward.2} parent=35 // pred_region
          %278 = dma.done %s271, 1024
        $region40: #{supcon_wsi_forward.2} parent=35 // pred_fallthru
          _
        // Predicated region
        $region41: #{supcon_wsi_forward.2} parent=35 // pred_check
          %p279 = pneg %p89
        $region42: #{supcon_wsi_forward.2} parent=35 // pred_check_branch
          %281 = sbr.rel (%p279) target = $region44
        $region43: #{supcon_wsi_forward.2} parent=35 // pred_region
          %282 = dma.done [#allocation7], 8192
        $region44: #{supcon_wsi_forward.2} parent=35 // pred_fallthru
          _
        // Predicated region
        $region45: #{supcon_wsi_forward.2} parent=35 // pred_check
          %p283 = pneg %p110
        $region46: #{supcon_wsi_forward.2} parent=35 // pred_check_branch
          %285 = sbr.rel (%p283) target = $region48
        $region47: #{supcon_wsi_forward.2} parent=35 // pred_region
          %286 = dma.done [#allocation7], 1024
        $region48: #{supcon_wsi_forward.2} parent=35 // pred_fallthru
          _
        // Predicated region
        $region49: #{supcon_wsi_forward.2} parent=35 // pred_check
          %p287 = pneg %p131
        $region50: #{supcon_wsi_forward.2} parent=35 // pred_check_branch
          %289 = sbr.rel (%p287) target = $region52
        $region51: #{supcon_wsi_forward.2} parent=35 // pred_region
          %290 = dma.done [#allocation10], 32
        $region52: #{supcon_wsi_forward.2} parent=35 // pred_fallthru
          _
        %s291 = sand.u32 %s50, 1
        %s292 = scalar_lea.sflag [#allocation4], %s291
        %s293 = sand.u32 %s50, 1
        %s294 = smul.addr %s293, 64
        %s295 = scalar_lea.vmem [#allocation3], %s294
        %p296 = pneg %p63
        %p297 = pneg %p60
        %p298 = pneg %p89
        %p299 = pneg %p86
        %p300 = pneg %p110
        %p301 = pneg %p107
        %p302 = pneg %p131
        %p303 = pneg %p128
        %p304 = pneg %p157
        %p305 = pneg %p154
        %s306 = sand.u32 %s144, 1
        %s307 = scalar_lea.sflag [#allocation5], %s306
        %s308 = sand.u32 %s144, 1
        %s309 = smul.addr %s308, 4
        %s310 = scalar_lea.vmem [#allocation11], %s309
        %p311 = pneg %p183
        %p312 = pneg %p180
        %s313 = sand.u32 %s170, 1
        %s314 = scalar_lea.sflag [#allocation13], %s313
        %s315 = sand.u32 %s170, 1
        %s316 = smul.addr %s315, 2
        %s317 = scalar_lea.vmem [#allocation12], %s316
        %s318 = smul.u32 8, %s33
        %s319 = smul.u32 128, %s33
        %p321 = scmp.eq.s32.totalorder %s33, 0
        // Predicated region
        $region53: #{supcon_wsi_forward.2} parent=35 // pred_check
          %p322 = pneg %p321
        $region54: #{supcon_wsi_forward.2} parent=35 // pred_check_branch
          %324 = sbr.rel (%p322) target = $region56
        $region55: #{supcon_wsi_forward.2} parent=35 // pred_region
          %325 = vst [vmem:[#allocation2] sm:$0xff] 0.0
        $region56: #{supcon_wsi_forward.2} parent=35 // pred_fallthru
          _
        %v326 = vld [vmem:[#allocation2] sm:$0xff]
        %v327 = vld [vmem:[%s274] sm:$0xff]
        %v328 = vld [vmem:[%s274 + $0x8] sm:$0xff]
        %v329 = vld [vmem:[%s274 + $0x10] sm:$0xff]
        %v330 = vld [vmem:[%s274 + $0x18] sm:$0xff]
        %v331 = vld [vmem:[%s274 + $0x20] sm:$0xff]
        %v332 = vld [vmem:[%s274 + $0x28] sm:$0xff]
        %v333 = vld [vmem:[%s274 + $0x30] sm:$0xff]
        %v334 = vld [vmem:[%s274 + $0x38] sm:$0xff]
        %v335 = vpack.c.bf16 %v327, %v327
        %v336 = vpack.c.bf16 %v328, %v328
        %v337 = vpack.c.bf16 %v329, %v329
        %v338 = vpack.c.bf16 %v330, %v330
        %v339 = vpack.c.bf16 %v331, %v331
        %v340 = vpack.c.bf16 %v332, %v332
        %v341 = vpack.c.bf16 %v333, %v333
        %v342 = vpack.c.bf16 %v334, %v334
        %v343 = vld [vmem:[#allocation6] sm:$0xf]
        %v344 = vld [vmem:[#allocation6 + $0x4] sm:$0xf]
        %v345 = vld [vmem:[#allocation6 + $0x8] sm:$0xf]
        %v346 = vld [vmem:[#allocation6 + $0xc] sm:$0xf]
        %v347 = vld [vmem:[#allocation6 + $0x10] sm:$0xf]
        %v348 = vld [vmem:[#allocation6 + $0x14] sm:$0xf]
        %v349 = vld [vmem:[#allocation6 + $0x18] sm:$0xf]
        %v350 = vld [vmem:[#allocation6 + $0x1c] sm:$0xf]
        %v351 = vld [vmem:[#allocation6 + $0x20] sm:$0xf]
        %v352 = vld [vmem:[#allocation6 + $0x24] sm:$0xf]
        %v353 = vld [vmem:[#allocation6 + $0x28] sm:$0xf]
        %v354 = vld [vmem:[#allocation6 + $0x2c] sm:$0xf]
        %v355 = vld [vmem:[#allocation6 + $0x30] sm:$0xf]
        %v356 = vld [vmem:[#allocation6 + $0x34] sm:$0xf]
        %v357 = vld [vmem:[#allocation6 + $0x38] sm:$0xf]
        %v358 = vld [vmem:[#allocation6 + $0x3c] sm:$0xf]
        %v359 = vld [vmem:[#allocation6 + $0x40] sm:$0xf]
        %v360 = vld [vmem:[#allocation6 + $0x44] sm:$0xf]
        %v361 = vld [vmem:[#allocation6 + $0x48] sm:$0xf]
        %v362 = vld [vmem:[#allocation6 + $0x4c] sm:$0xf]
        %v363 = vld [vmem:[#allocation6 + $0x50] sm:$0xf]
        %v364 = vld [vmem:[#allocation6 + $0x54] sm:$0xf]
        %v365 = vld [vmem:[#allocation6 + $0x58] sm:$0xf]
        %v366 = vld [vmem:[#allocation6 + $0x5c] sm:$0xf]
        %v367 = vld [vmem:[#allocation6 + $0x60] sm:$0xf]
        %v368 = vld [vmem:[#allocation6 + $0x64] sm:$0xf]
        %v369 = vld [vmem:[#allocation6 + $0x68] sm:$0xf]
        %v370 = vld [vmem:[#allocation6 + $0x6c] sm:$0xf]
        %v371 = vld [vmem:[#allocation6 + $0x70] sm:$0xf]
        %v372 = vld [vmem:[#allocation6 + $0x74] sm:$0xf]
        %v373 = vld [vmem:[#allocation6 + $0x78] sm:$0xf]
        %v374 = vld [vmem:[#allocation6 + $0x7c] sm:$0xf]
        %v375 = vld [vmem:[#allocation6 + $0x80] sm:$0xf]
        %v376 = vld [vmem:[#allocation6 + $0x84] sm:$0xf]
        %v377 = vld [vmem:[#allocation6 + $0x88] sm:$0xf]
        %v378 = vld [vmem:[#allocation6 + $0x8c] sm:$0xf]
        %v379 = vld [vmem:[#allocation6 + $0x90] sm:$0xf]
        %v380 = vld [vmem:[#allocation6 + $0x94] sm:$0xf]
        %v381 = vld [vmem:[#allocation6 + $0x98] sm:$0xf]
        %v382 = vld [vmem:[#allocation6 + $0x9c] sm:$0xf]
        %v383 = vld [vmem:[#allocation6 + $0xa0] sm:$0xf]
        %v384 = vld [vmem:[#allocation6 + $0xa4] sm:$0xf]
        %v385 = vld [vmem:[#allocation6 + $0xa8] sm:$0xf]
        %v386 = vld [vmem:[#allocation6 + $0xac] sm:$0xf]
        %v387 = vld [vmem:[#allocation6 + $0xb0] sm:$0xf]
        %v388 = vld [vmem:[#allocation6 + $0xb4] sm:$0xf]
        %v389 = vld [vmem:[#allocation6 + $0xb8] sm:$0xf]
        %v390 = vld [vmem:[#allocation6 + $0xbc] sm:$0xf]
        %v391 = vld [vmem:[#allocation6 + $0xc0] sm:$0xf]
        %v392 = vld [vmem:[#allocation6 + $0xc4] sm:$0xf]
        %v393 = vld [vmem:[#allocation6 + $0xc8] sm:$0xf]
        %v394 = vld [vmem:[#allocation6 + $0xcc] sm:$0xf]
        %v395 = vld [vmem:[#allocation6 + $0xd0] sm:$0xf]
        %v396 = vld [vmem:[#allocation6 + $0xd4] sm:$0xf]
        %v397 = vld [vmem:[#allocation6 + $0xd8] sm:$0xf]
        %v398 = vld [vmem:[#allocation6 + $0xdc] sm:$0xf]
        %v399 = vld [vmem:[#allocation6 + $0xe0] sm:$0xf]
        %v400 = vld [vmem:[#allocation6 + $0xe4] sm:$0xf]
        %v401 = vld [vmem:[#allocation6 + $0xe8] sm:$0xf]
        %v402 = vld [vmem:[#allocation6 + $0xec] sm:$0xf]
        %v403 = vld [vmem:[#allocation6 + $0xf0] sm:$0xf]
        %v404 = vld [vmem:[#allocation6 + $0xf4] sm:$0xf]
        %v405 = vld [vmem:[#allocation6 + $0xf8] sm:$0xf]
        %v406 = vld [vmem:[#allocation6 + $0xfc] sm:$0xf]
        %v407 = vld [vmem:[#allocation6 + $0x100] sm:$0xf]
        %v408 = vld [vmem:[#allocation6 + $0x104] sm:$0xf]
        %v409 = vld [vmem:[#allocation6 + $0x108] sm:$0xf]
        %v410 = vld [vmem:[#allocation6 + $0x10c] sm:$0xf]
        %v411 = vld [vmem:[#allocation6 + $0x110] sm:$0xf]
        %v412 = vld [vmem:[#allocation6 + $0x114] sm:$0xf]
        %v413 = vld [vmem:[#allocation6 + $0x118] sm:$0xf]
        %v414 = vld [vmem:[#allocation6 + $0x11c] sm:$0xf]
        %v415 = vld [vmem:[#allocation6 + $0x120] sm:$0xf]
        %v416 = vld [vmem:[#allocation6 + $0x124] sm:$0xf]
        %v417 = vld [vmem:[#allocation6 + $0x128] sm:$0xf]
        %v418 = vld [vmem:[#allocation6 + $0x12c] sm:$0xf]
        %v419 = vld [vmem:[#allocation6 + $0x130] sm:$0xf]
        %v420 = vld [vmem:[#allocation6 + $0x134] sm:$0xf]
        %v421 = vld [vmem:[#allocation6 + $0x138] sm:$0xf]
        %v422 = vld [vmem:[#allocation6 + $0x13c] sm:$0xf]
        %v423 = vld [vmem:[#allocation6 + $0x140] sm:$0xf]
        %v424 = vld [vmem:[#allocation6 + $0x144] sm:$0xf]
        %v425 = vld [vmem:[#allocation6 + $0x148] sm:$0xf]
        %v426 = vld [vmem:[#allocation6 + $0x14c] sm:$0xf]
        %v427 = vld [vmem:[#allocation6 + $0x150] sm:$0xf]
        %v428 = vld [vmem:[#allocation6 + $0x154] sm:$0xf]
        %v429 = vld [vmem:[#allocation6 + $0x158] sm:$0xf]
        %v430 = vld [vmem:[#allocation6 + $0x15c] sm:$0xf]
        %v431 = vld [vmem:[#allocation6 + $0x160] sm:$0xf]
        %v432 = vld [vmem:[#allocation6 + $0x164] sm:$0xf]
        %v433 = vld [vmem:[#allocation6 + $0x168] sm:$0xf]
        %v434 = vld [vmem:[#allocation6 + $0x16c] sm:$0xf]
        %v435 = vld [vmem:[#allocation6 + $0x170] sm:$0xf]
        %v436 = vld [vmem:[#allocation6 + $0x174] sm:$0xf]
        %v437 = vld [vmem:[#allocation6 + $0x178] sm:$0xf]
        %v438 = vld [vmem:[#allocation6 + $0x17c] sm:$0xf]
        %v439 = vld [vmem:[#allocation6 + $0x180] sm:$0xf]
        %v440 = vld [vmem:[#allocation6 + $0x184] sm:$0xf]
        %v441 = vld [vmem:[#allocation6 + $0x188] sm:$0xf]
        %v442 = vld [vmem:[#allocation6 + $0x18c] sm:$0xf]
        %v443 = vld [vmem:[#allocation6 + $0x190] sm:$0xf]
        %v444 = vld [vmem:[#allocation6 + $0x194] sm:$0xf]
        %v445 = vld [vmem:[#allocation6 + $0x198] sm:$0xf]
        %v446 = vld [vmem:[#allocation6 + $0x19c] sm:$0xf]
        %v447 = vld [vmem:[#allocation6 + $0x1a0] sm:$0xf]
        %v448 = vld [vmem:[#allocation6 + $0x1a4] sm:$0xf]
        %v449 = vld [vmem:[#allocation6 + $0x1a8] sm:$0xf]
        %v450 = vld [vmem:[#allocation6 + $0x1ac] sm:$0xf]
        %v451 = vld [vmem:[#allocation6 + $0x1b0] sm:$0xf]
        %v452 = vld [vmem:[#allocation6 + $0x1b4] sm:$0xf]
        %v453 = vld [vmem:[#allocation6 + $0x1b8] sm:$0xf]
        %v454 = vld [vmem:[#allocation6 + $0x1bc] sm:$0xf]
        %v455 = vld [vmem:[#allocation6 + $0x1c0] sm:$0xf]
        %v456 = vld [vmem:[#allocation6 + $0x1c4] sm:$0xf]
        %v457 = vld [vmem:[#allocation6 + $0x1c8] sm:$0xf]
        %v458 = vld [vmem:[#allocation6 + $0x1cc] sm:$0xf]
        %v459 = vld [vmem:[#allocation6 + $0x1d0] sm:$0xf]
        %v460 = vld [vmem:[#allocation6 + $0x1d4] sm:$0xf]
        %v461 = vld [vmem:[#allocation6 + $0x1d8] sm:$0xf]
        %v462 = vld [vmem:[#allocation6 + $0x1dc] sm:$0xf]
        %v463 = vld [vmem:[#allocation6 + $0x1e0] sm:$0xf]
        %v464 = vld [vmem:[#allocation6 + $0x1e4] sm:$0xf]
        %v465 = vld [vmem:[#allocation6 + $0x1e8] sm:$0xf]
        %v466 = vld [vmem:[#allocation6 + $0x1ec] sm:$0xf]
        %v467 = vld [vmem:[#allocation6 + $0x1f0] sm:$0xf]
        %v468 = vld [vmem:[#allocation6 + $0x1f4] sm:$0xf]
        %v469 = vld [vmem:[#allocation6 + $0x1f8] sm:$0xf]
        %v470 = vld [vmem:[#allocation6 + $0x1fc] sm:$0xf]
        %v599 = vunpack.c.l.b16 %v343
        %v600 = vunpack.c.l.b16 %v344
        %v601 = vunpack.c.l.b16 %v345
        %v602 = vunpack.c.l.b16 %v346
        %v603 = vunpack.c.l.b16 %v347
        %v604 = vunpack.c.l.b16 %v348
        %v605 = vunpack.c.l.b16 %v349
        %v606 = vunpack.c.l.b16 %v350
        %v607 = vunpack.c.l.b16 %v351
        %v608 = vunpack.c.l.b16 %v352
        %v609 = vunpack.c.l.b16 %v353
        %v610 = vunpack.c.l.b16 %v354
        %v611 = vunpack.c.l.b16 %v355
        %v612 = vunpack.c.l.b16 %v356
        %v613 = vunpack.c.l.b16 %v357
        %v614 = vunpack.c.l.b16 %v358
        %v615 = vunpack.c.l.b16 %v359
        %v616 = vunpack.c.l.b16 %v360
        %v617 = vunpack.c.l.b16 %v361
        %v618 = vunpack.c.l.b16 %v362
        %v619 = vunpack.c.l.b16 %v363
        %v620 = vunpack.c.l.b16 %v364
        %v621 = vunpack.c.l.b16 %v365
        %v622 = vunpack.c.l.b16 %v366
        %v623 = vunpack.c.l.b16 %v367
        %v624 = vunpack.c.l.b16 %v368
        %v625 = vunpack.c.l.b16 %v369
        %v626 = vunpack.c.l.b16 %v370
        %v627 = vunpack.c.l.b16 %v371
        %v628 = vunpack.c.l.b16 %v372
        %v629 = vunpack.c.l.b16 %v373
        %v630 = vunpack.c.l.b16 %v374
        %v631 = vunpack.c.l.b16 %v375
        %v632 = vunpack.c.l.b16 %v376
        %v633 = vunpack.c.l.b16 %v377
        %v634 = vunpack.c.l.b16 %v378
        %v635 = vunpack.c.l.b16 %v379
        %v636 = vunpack.c.l.b16 %v380
        %v637 = vunpack.c.l.b16 %v381
        %v638 = vunpack.c.l.b16 %v382
        %v639 = vunpack.c.l.b16 %v383
        %v640 = vunpack.c.l.b16 %v384
        %v641 = vunpack.c.l.b16 %v385
        %v642 = vunpack.c.l.b16 %v386
        %v643 = vunpack.c.l.b16 %v387
        %v644 = vunpack.c.l.b16 %v388
        %v645 = vunpack.c.l.b16 %v389
        %v646 = vunpack.c.l.b16 %v390
        %v647 = vunpack.c.l.b16 %v391
        %v648 = vunpack.c.l.b16 %v392
        %v649 = vunpack.c.l.b16 %v393
        %v650 = vunpack.c.l.b16 %v394
        %v651 = vunpack.c.l.b16 %v395
        %v652 = vunpack.c.l.b16 %v396
        %v653 = vunpack.c.l.b16 %v397
        %v654 = vunpack.c.l.b16 %v398
        %v655 = vunpack.c.l.b16 %v399
        %v656 = vunpack.c.l.b16 %v400
        %v657 = vunpack.c.l.b16 %v401
        %v658 = vunpack.c.l.b16 %v402
        %v659 = vunpack.c.l.b16 %v403
        %v660 = vunpack.c.l.b16 %v404
        %v661 = vunpack.c.l.b16 %v405
        %v662 = vunpack.c.l.b16 %v406
        %v663 = vunpack.c.l.b16 %v407
        %v664 = vunpack.c.l.b16 %v408
        %v665 = vunpack.c.l.b16 %v409
        %v666 = vunpack.c.l.b16 %v410
        %v667 = vunpack.c.l.b16 %v411
        %v668 = vunpack.c.l.b16 %v412
        %v669 = vunpack.c.l.b16 %v413
        %v670 = vunpack.c.l.b16 %v414
        %v671 = vunpack.c.l.b16 %v415
        %v672 = vunpack.c.l.b16 %v416
        %v673 = vunpack.c.l.b16 %v417
        %v674 = vunpack.c.l.b16 %v418
        %v675 = vunpack.c.l.b16 %v419
        %v676 = vunpack.c.l.b16 %v420
        %v677 = vunpack.c.l.b16 %v421
        %v678 = vunpack.c.l.b16 %v422
        %v679 = vunpack.c.l.b16 %v423
        %v680 = vunpack.c.l.b16 %v424
        %v681 = vunpack.c.l.b16 %v425
        %v682 = vunpack.c.l.b16 %v426
        %v683 = vunpack.c.l.b16 %v427
        %v684 = vunpack.c.l.b16 %v428
        %v685 = vunpack.c.l.b16 %v429
        %v686 = vunpack.c.l.b16 %v430
        %v687 = vunpack.c.l.b16 %v431
        %v688 = vunpack.c.l.b16 %v432
        %v689 = vunpack.c.l.b16 %v433
        %v690 = vunpack.c.l.b16 %v434
        %v691 = vunpack.c.l.b16 %v435
        %v692 = vunpack.c.l.b16 %v436
        %v693 = vunpack.c.l.b16 %v437
        %v694 = vunpack.c.l.b16 %v438
        %v695 = vunpack.c.l.b16 %v439
        %v696 = vunpack.c.l.b16 %v440
        %v697 = vunpack.c.l.b16 %v441
        %v698 = vunpack.c.l.b16 %v442
        %v699 = vunpack.c.l.b16 %v443
        %v700 = vunpack.c.l.b16 %v444
        %v701 = vunpack.c.l.b16 %v445
        %v702 = vunpack.c.l.b16 %v446
        %v703 = vunpack.c.l.b16 %v447
        %v704 = vunpack.c.l.b16 %v448
        %v705 = vunpack.c.l.b16 %v449
        %v706 = vunpack.c.l.b16 %v450
        %v707 = vunpack.c.l.b16 %v451
        %v708 = vunpack.c.l.b16 %v452
        %v709 = vunpack.c.l.b16 %v453
        %v710 = vunpack.c.l.b16 %v454
        %v711 = vunpack.c.l.b16 %v455
        %v712 = vunpack.c.l.b16 %v456
        %v713 = vunpack.c.l.b16 %v457
        %v714 = vunpack.c.l.b16 %v458
        %v715 = vunpack.c.l.b16 %v459
        %v716 = vunpack.c.l.b16 %v460
        %v717 = vunpack.c.l.b16 %v461
        %v718 = vunpack.c.l.b16 %v462
        %v719 = vunpack.c.l.b16 %v463
        %v720 = vunpack.c.l.b16 %v464
        %v721 = vunpack.c.l.b16 %v465
        %v722 = vunpack.c.l.b16 %v466
        %v723 = vunpack.c.l.b16 %v467
        %v724 = vunpack.c.l.b16 %v468
        %v725 = vunpack.c.l.b16 %v469
        %v726 = vunpack.c.l.b16 %v470
        %v727 = vpack.c.b16 %v600, %v599
        %v728 = vpack.c.b16 %v602, %v601
        %v729 = vpack.c.b16 %v604, %v603
        %v730 = vpack.c.b16 %v606, %v605
        %v731 = vpack.c.b16 %v608, %v607
        %v732 = vpack.c.b16 %v610, %v609
        %v733 = vpack.c.b16 %v612, %v611
        %v734 = vpack.c.b16 %v614, %v613
        %v735 = vpack.c.b16 %v616, %v615
        %v736 = vpack.c.b16 %v618, %v617
        %v737 = vpack.c.b16 %v620, %v619
        %v738 = vpack.c.b16 %v622, %v621
        %v739 = vpack.c.b16 %v624, %v623
        %v740 = vpack.c.b16 %v626, %v625
        %v741 = vpack.c.b16 %v628, %v627
        %v742 = vpack.c.b16 %v630, %v629
        %v743 = vpack.c.b16 %v632, %v631
        %v744 = vpack.c.b16 %v634, %v633
        %v745 = vpack.c.b16 %v636, %v635
        %v746 = vpack.c.b16 %v638, %v637
        %v747 = vpack.c.b16 %v640, %v639
        %v748 = vpack.c.b16 %v642, %v641
        %v749 = vpack.c.b16 %v644, %v643
        %v750 = vpack.c.b16 %v646, %v645
        %v751 = vpack.c.b16 %v648, %v647
        %v752 = vpack.c.b16 %v650, %v649
        %v753 = vpack.c.b16 %v652, %v651
        %v754 = vpack.c.b16 %v654, %v653
        %v755 = vpack.c.b16 %v656, %v655
        %v756 = vpack.c.b16 %v658, %v657
        %v757 = vpack.c.b16 %v660, %v659
        %v758 = vpack.c.b16 %v662, %v661
        %v759 = vpack.c.b16 %v664, %v663
        %v760 = vpack.c.b16 %v666, %v665
        %v761 = vpack.c.b16 %v668, %v667
        %v762 = vpack.c.b16 %v670, %v669
        %v763 = vpack.c.b16 %v672, %v671
        %v764 = vpack.c.b16 %v674, %v673
        %v765 = vpack.c.b16 %v676, %v675
        %v766 = vpack.c.b16 %v678, %v677
        %v767 = vpack.c.b16 %v680, %v679
        %v768 = vpack.c.b16 %v682, %v681
        %v769 = vpack.c.b16 %v684, %v683
        %v770 = vpack.c.b16 %v686, %v685
        %v771 = vpack.c.b16 %v688, %v687
        %v772 = vpack.c.b16 %v690, %v689
        %v773 = vpack.c.b16 %v692, %v691
        %v774 = vpack.c.b16 %v694, %v693
        %v775 = vpack.c.b16 %v696, %v695
        %v776 = vpack.c.b16 %v698, %v697
        %v777 = vpack.c.b16 %v700, %v699
        %v778 = vpack.c.b16 %v702, %v701
        %v779 = vpack.c.b16 %v704, %v703
        %v780 = vpack.c.b16 %v706, %v705
        %v781 = vpack.c.b16 %v708, %v707
        %v782 = vpack.c.b16 %v710, %v709
        %v783 = vpack.c.b16 %v712, %v711
        %v784 = vpack.c.b16 %v714, %v713
        %v785 = vpack.c.b16 %v716, %v715
        %v786 = vpack.c.b16 %v718, %v717
        %v787 = vpack.c.b16 %v720, %v719
        %v788 = vpack.c.b16 %v722, %v721
        %v789 = vpack.c.b16 %v724, %v723
        %v790 = vpack.c.b16 %v726, %v725
        %855 = vmatprep.subr.bf16.mxu0 0
        %856 = vmatpush1.bf16.msra.mxu0 %v727
        %857 = vmatprep.subr.bf16.mxu0 0
        %858 = vmatpush1.bf16.msra.mxu0 %v728
        %859 = vmatprep.subr.bf16.mxu0 0
        %860 = vmatpush1.bf16.msra.mxu0 %v729
        %861 = vmatprep.subr.bf16.mxu0 0
        %862 = vmatpush1.bf16.msra.mxu0 %v730
        %863 = vmatprep.subr.bf16.mxu0 0
        %864 = vmatpush1.bf16.msra.mxu0 %v731
        %865 = vmatprep.subr.bf16.mxu0 0
        %866 = vmatpush1.bf16.msra.mxu0 %v732
        %867 = vmatprep.subr.bf16.mxu0 0
        %868 = vmatpush1.bf16.msra.mxu0 %v733
        %869 = vmatprep.subr.bf16.mxu0 0
        %870 = vmatpush1.bf16.msra.mxu0 %v734
        %871 = vmatprep.subr.bf16.mxu0 0
        %872 = vmatpush1.bf16.msra.mxu0 %v735
        %873 = vmatprep.subr.bf16.mxu0 0
        %874 = vmatpush1.bf16.msra.mxu0 %v736
        %875 = vmatprep.subr.bf16.mxu0 0
        %876 = vmatpush1.bf16.msra.mxu0 %v737
        %877 = vmatprep.subr.bf16.mxu0 0
        %878 = vmatpush1.bf16.msra.mxu0 %v738
        %879 = vmatprep.subr.bf16.mxu0 0
        %880 = vmatpush1.bf16.msra.mxu0 %v739
        %881 = vmatprep.subr.bf16.mxu0 0
        %882 = vmatpush1.bf16.msra.mxu0 %v740
        %883 = vmatprep.subr.bf16.mxu0 0
        %884 = vmatpush1.bf16.msra.mxu0 %v741
        %885 = vmatprep.subr.bf16.mxu0 0
        %886 = vmatpush1.bf16.msra.mxu0 %v742
        %887 = vmatprep.mubr.bf16.mxu0 %v336
        %888 = vmatmul.mubr.bf16.gmra.mrb[0].mxu0 %v335
        %v889 = vpop.f32.mrb[0].mxu0
        %v890 = vadd.f32 0.0, %v889
        %v891 = vpop.f32.mrb[0].mxu0
        %v892 = vpop.f32.mrb[0].mxu0
        %v893 = vpop.f32.mrb[0].mxu0
        %894 = vdwg.mxu0
        %895 = vmatprep.subr.bf16.mxu0 0
        %896 = vmatpush1.bf16.msra.mxu0 %v743
        %897 = vmatprep.subr.bf16.mxu0 0
        %898 = vmatpush1.bf16.msra.mxu0 %v744
        %899 = vmatprep.subr.bf16.mxu0 0
        %900 = vmatpush1.bf16.msra.mxu0 %v745
        %901 = vmatprep.subr.bf16.mxu0 0
        %902 = vmatpush1.bf16.msra.mxu0 %v746
        %903 = vmatprep.subr.bf16.mxu0 0
        %904 = vmatpush1.bf16.msra.mxu0 %v747
        %905 = vmatprep.subr.bf16.mxu0 0
        %906 = vmatpush1.bf16.msra.mxu0 %v748
        %907 = vmatprep.subr.bf16.mxu0 0
        %908 = vmatpush1.bf16.msra.mxu0 %v749
        %909 = vmatprep.subr.bf16.mxu0 0
        %910 = vmatpush1.bf16.msra.mxu0 %v750
        %911 = vmatprep.subr.bf16.mxu0 0
        %912 = vmatpush1.bf16.msra.mxu0 %v751
        %913 = vmatprep.subr.bf16.mxu0 0
        %914 = vmatpush1.bf16.msra.mxu0 %v752
        %915 = vmatprep.subr.bf16.mxu0 0
        %916 = vmatpush1.bf16.msra.mxu0 %v753
        %917 = vmatprep.subr.bf16.mxu0 0
        %918 = vmatpush1.bf16.msra.mxu0 %v754
        %919 = vmatprep.subr.bf16.mxu0 0
        %920 = vmatpush1.bf16.msra.mxu0 %v755
        %921 = vmatprep.subr.bf16.mxu0 0
        %922 = vmatpush1.bf16.msra.mxu0 %v756
        %923 = vmatprep.subr.bf16.mxu0 0
        %924 = vmatpush1.bf16.msra.mxu0 %v757
        %925 = vmatprep.subr.bf16.mxu0 0
        %926 = vmatpush1.bf16.msra.mxu0 %v758
        %927 = vmatprep.mubr.bf16.mxu0 %v338
        %928 = vmatmul.mubr.bf16.gmra.mrb[0].mxu0 %v337
        %v929 = vpop.f32.mrb[0].mxu0
        %v930 = vadd.f32 %v890, %v929
        %v931 = vpop.f32.mrb[0].mxu0
        %v932 = vpop.f32.mrb[0].mxu0
        %v933 = vpop.f32.mrb[0].mxu0
        %934 = vdwg.mxu0
        %935 = vmatprep.subr.bf16.mxu0 0
        %936 = vmatpush1.bf16.msra.mxu0 %v759
        %937 = vmatprep.subr.bf16.mxu0 0
        %938 = vmatpush1.bf16.msra.mxu0 %v760
        %939 = vmatprep.subr.bf16.mxu0 0
        %940 = vmatpush1.bf16.msra.mxu0 %v761
        %941 = vmatprep.subr.bf16.mxu0 0
        %942 = vmatpush1.bf16.msra.mxu0 %v762
        %943 = vmatprep.subr.bf16.mxu0 0
        %944 = vmatpush1.bf16.msra.mxu0 %v763
        %945 = vmatprep.subr.bf16.mxu0 0
        %946 = vmatpush1.bf16.msra.mxu0 %v764
        %947 = vmatprep.subr.bf16.mxu0 0
        %948 = vmatpush1.bf16.msra.mxu0 %v765
        %949 = vmatprep.subr.bf16.mxu0 0
        %950 = vmatpush1.bf16.msra.mxu0 %v766
        %951 = vmatprep.subr.bf16.mxu0 0
        %952 = vmatpush1.bf16.msra.mxu0 %v767
        %953 = vmatprep.subr.bf16.mxu0 0
        %954 = vmatpush1.bf16.msra.mxu0 %v768
        %955 = vmatprep.subr.bf16.mxu0 0
        %956 = vmatpush1.bf16.msra.mxu0 %v769
        %957 = vmatprep.subr.bf16.mxu0 0
        %958 = vmatpush1.bf16.msra.mxu0 %v770
        %959 = vmatprep.subr.bf16.mxu0 0
        %960 = vmatpush1.bf16.msra.mxu0 %v771
        %961 = vmatprep.subr.bf16.mxu0 0
        %962 = vmatpush1.bf16.msra.mxu0 %v772
        %963 = vmatprep.subr.bf16.mxu0 0
        %964 = vmatpush1.bf16.msra.mxu0 %v773
        %965 = vmatprep.subr.bf16.mxu0 0
        %966 = vmatpush1.bf16.msra.mxu0 %v774
        %967 = vmatprep.mubr.bf16.mxu0 %v340
        %968 = vmatmul.mubr.bf16.gmra.mrb[0].mxu0 %v339
        %v969 = vpop.f32.mrb[0].mxu0
        %v970 = vadd.f32 %v930, %v969
        %v971 = vpop.f32.mrb[0].mxu0
        %v972 = vpop.f32.mrb[0].mxu0
        %v973 = vpop.f32.mrb[0].mxu0
        %974 = vdwg.mxu0
        %975 = vmatprep.subr.bf16.mxu0 0
        %976 = vmatpush1.bf16.msra.mxu0 %v775
        %977 = vmatprep.subr.bf16.mxu0 0
        %978 = vmatpush1.bf16.msra.mxu0 %v776
        %979 = vmatprep.subr.bf16.mxu0 0
        %980 = vmatpush1.bf16.msra.mxu0 %v777
        %981 = vmatprep.subr.bf16.mxu0 0
        %982 = vmatpush1.bf16.msra.mxu0 %v778
        %983 = vmatprep.subr.bf16.mxu0 0
        %984 = vmatpush1.bf16.msra.mxu0 %v779
        %985 = vmatprep.subr.bf16.mxu0 0
        %986 = vmatpush1.bf16.msra.mxu0 %v780
        %987 = vmatprep.subr.bf16.mxu0 0
        %988 = vmatpush1.bf16.msra.mxu0 %v781
        %989 = vmatprep.subr.bf16.mxu0 0
        %990 = vmatpush1.bf16.msra.mxu0 %v782
        %991 = vmatprep.subr.bf16.mxu0 0
        %992 = vmatpush1.bf16.msra.mxu0 %v783
        %993 = vmatprep.subr.bf16.mxu0 0
        %994 = vmatpush1.bf16.msra.mxu0 %v784
        %995 = vmatprep.subr.bf16.mxu0 0
        %996 = vmatpush1.bf16.msra.mxu0 %v785
        %997 = vmatprep.subr.bf16.mxu0 0
        %998 = vmatpush1.bf16.msra.mxu0 %v786
        %999 = vmatprep.subr.bf16.mxu0 0
        %1000 = vmatpush1.bf16.msra.mxu0 %v787
        %1001 = vmatprep.subr.bf16.mxu0 0
        %1002 = vmatpush1.bf16.msra.mxu0 %v788
        %1003 = vmatprep.subr.bf16.mxu0 0
        %1004 = vmatpush1.bf16.msra.mxu0 %v789
        %1005 = vmatprep.subr.bf16.mxu0 0
        %1006 = vmatpush1.bf16.msra.mxu0 %v790
        %1007 = vmatprep.mubr.bf16.mxu0 %v342
        %1008 = vmatmul.mubr.bf16.gmra.mrb[0].mxu0 %v341
        %v1009 = vpop.f32.mrb[0].mxu0
        %v1010 = vadd.f32 %v970, %v1009
        %v1011 = vpop.f32.mrb[0].mxu0
        %v1012 = vpop.f32.mrb[0].mxu0
        %v1013 = vpop.f32.mrb[0].mxu0
        %1014 = vdwg.mxu0
        %v1015 = vadd.f32 %v326, %v1010
        %1016 = vst [vmem:[#allocation2] sm:$0xff] %v1015
        // Predicated region
        $region57: #{supcon_wsi_forward.2} parent=35 // pred_check
          %p1017 = pneg %p321
        $region58: #{supcon_wsi_forward.2} parent=35 // pred_check_branch
          %1019 = sbr.rel (%p1017) target = $region60
        $region59: #{supcon_wsi_forward.2} parent=35 // pred_region
          %v1020 = vld [vmem:[#allocation9] sm:$0x1]
          %v1021 = vld [vmem:[#allocation9 + $0x1] sm:$0x1]
          %v1022 = vld [vmem:[#allocation2] sm:$0xff]
          %v1023 = vlaneseq
          %v1024 = vshrl.u32 %v1023, 7
          %v1025 = vsub.s32 0, %v1024
          %v1026 = vrot.slane %v1020, %v1025
          %v1027 = vadd.f32 %v1022, %v1026
          %v1028 = vpack.c.bf16 %v1027, %v1027
          %v1029 = vld [vmem:[#allocation8] sm:$0xf]
          %v1030 = vld [vmem:[#allocation8 + $0x4] sm:$0xf]
          %v1031 = vld [vmem:[#allocation8 + $0x8] sm:$0xf]
          %v1032 = vld [vmem:[#allocation8 + $0xc] sm:$0xf]
          %v1033 = vld [vmem:[#allocation8 + $0x10] sm:$0xf]
          %v1034 = vld [vmem:[#allocation8 + $0x14] sm:$0xf]
          %v1035 = vld [vmem:[#allocation8 + $0x18] sm:$0xf]
          %v1036 = vld [vmem:[#allocation8 + $0x1c] sm:$0xf]
          %v1037 = vld [vmem:[#allocation8 + $0x20] sm:$0xf]
          %v1038 = vld [vmem:[#allocation8 + $0x24] sm:$0xf]
          %v1039 = vld [vmem:[#allocation8 + $0x28] sm:$0xf]
          %v1040 = vld [vmem:[#allocation8 + $0x2c] sm:$0xf]
          %v1041 = vld [vmem:[#allocation8 + $0x30] sm:$0xf]
          %v1042 = vld [vmem:[#allocation8 + $0x34] sm:$0xf]
          %v1043 = vld [vmem:[#allocation8 + $0x38] sm:$0xf]
          %v1044 = vld [vmem:[#allocation8 + $0x3c] sm:$0xf]
          %v1045 = vlaneseq
          %v1046 = vshrl.u32 %v1045, 7
          %v1047 = vsub.s32 0, %v1046
          %v1048 = vrot.slane %v1021, %v1047
          %v1065 = vunpack.c.l.b16 %v1029
          %v1066 = vunpack.c.l.b16 %v1030
          %v1067 = vunpack.c.l.b16 %v1031
          %v1068 = vunpack.c.l.b16 %v1032
          %v1069 = vunpack.c.l.b16 %v1033
          %v1070 = vunpack.c.l.b16 %v1034
          %v1071 = vunpack.c.l.b16 %v1035
          %v1072 = vunpack.c.l.b16 %v1036
          %v1073 = vunpack.c.l.b16 %v1037
          %v1074 = vunpack.c.l.b16 %v1038
          %v1075 = vunpack.c.l.b16 %v1039
          %v1076 = vunpack.c.l.b16 %v1040
          %v1077 = vunpack.c.l.b16 %v1041
          %v1078 = vunpack.c.l.b16 %v1042
          %v1079 = vunpack.c.l.b16 %v1043
          %v1080 = vunpack.c.l.b16 %v1044
          %v1081 = vpack.c.b16 %v1066, %v1065
          %v1082 = vpack.c.b16 %v1068, %v1067
          %v1083 = vpack.c.b16 %v1070, %v1069
          %v1084 = vpack.c.b16 %v1072, %v1071
          %v1085 = vpack.c.b16 %v1074, %v1073
          %v1086 = vpack.c.b16 %v1076, %v1075
          %v1087 = vpack.c.b16 %v1078, %v1077
          %v1088 = vpack.c.b16 %v1080, %v1079
          %1097 = vmatprep.subr.bf16.mxu0 0
          %1098 = vmatpush1.bf16.msra.mxu0 %v1081
          %1099 = vmatprep.subr.bf16.mxu0 0
          %1100 = vmatpush1.bf16.msra.mxu0 %v1082
          %1101 = vmatprep.subr.bf16.mxu0 0
          %1102 = vmatpush1.bf16.msra.mxu0 %v1083
          %1103 = vmatprep.subr.bf16.mxu0 0
          %1104 = vmatpush1.bf16.msra.mxu0 %v1084
          %1105 = vmatprep.subr.bf16.mxu0 0
          %1106 = vmatpush1.bf16.msra.mxu0 %v1085
          %1107 = vmatprep.subr.bf16.mxu0 0
          %1108 = vmatpush1.bf16.msra.mxu0 %v1086
          %1109 = vmatprep.subr.bf16.mxu0 0
          %1110 = vmatpush1.bf16.msra.mxu0 %v1087
          %1111 = vmatprep.subr.bf16.mxu0 0
          %1112 = vmatpush1.bf16.msra.mxu0 %v1088
          %1113 = vmatprep.subr.bf16.mxu0 0
          %1114 = vmatpush1.bf16.msra.mxu0 0
          %1115 = vmatprep.subr.bf16.mxu0 0
          %1116 = vmatpush1.bf16.msra.mxu0 0
          %1117 = vmatprep.subr.bf16.mxu0 0
          %1118 = vmatpush1.bf16.msra.mxu0 0
          %1119 = vmatprep.subr.bf16.mxu0 0
          %1120 = vmatpush1.bf16.msra.mxu0 0
          %1121 = vmatprep.subr.bf16.mxu0 0
          %1122 = vmatpush1.bf16.msra.mxu0 0
          %1123 = vmatprep.subr.bf16.mxu0 0
          %1124 = vmatpush1.bf16.msra.mxu0 0
          %1125 = vmatprep.subr.bf16.mxu0 0
          %1126 = vmatpush1.bf16.msra.mxu0 0
          %1127 = vmatprep.subr.bf16.mxu0 0
          %1128 = vmatpush1.bf16.msra.mxu0 0
          %1129 = vmatprep.mubr.bf16.mxu0 0
          %1130 = vmatmul.mubr.bf16.gmra.mrb[0].mxu0 %v1028
          %v1131 = vpop.f32.mrb[0].mxu0
          %v1132 = vadd.f32 %v1048, %v1131
          %v1133 = vpop.f32.mrb[0].mxu0
          %v1134 = vpop.f32.mrb[0].mxu0
          %v1135 = vpop.f32.mrb[0].mxu0
          %1136 = vdwg.mxu0
          %v1137 = vpack.c.bf16 %v1132, %v1132
          %1138 = vst [vmem:[%s310] sm:$0xf] %v1137
          %v1139 = vrot.slane %v1132, 4
          %v1140 = vadd.f32 %v1132, %v1139
          %v1141 = vrot.slane %v1140, 2
          %v1142 = vadd.f32 %v1140, %v1141
          %v1143 = vrot.slane %v1142, 1
          %v1144 = vadd.f32 %v1142, %v1143
          %1145 = vst [vmem:[%s317] sm:$0x1] %v1144
          %v1146 = vmul.f32 %v1132, %v1132
          %v1147 = vrot.slane %v1146, 4
          %v1148 = vadd.f32 %v1146, %v1147
          %v1149 = vrot.slane %v1148, 2
          %v1150 = vadd.f32 %v1148, %v1149
          %v1151 = vrot.slane %v1150, 1
          %v1152 = vadd.f32 %v1150, %v1151
          %1153 = vst [vmem:[%s317 + $0x1] sm:$0x1] %v1152
        $region60: #{supcon_wsi_forward.2} parent=35 // pred_fallthru
          _
        %s1154 = sand.u32 %s144, 1
        %s1155 = scalar_lea.sflag [#allocation5], %s1154
        %s1156 = sand.u32 %s144, 1
        %s1157 = smul.addr %s1156, 4
        %s1158 = scalar_lea.vmem [#allocation11], %s1157
        %s1159 = sand.u32 %s170, 1
        %s1160 = scalar_lea.sflag [#allocation13], %s1159
        %s1161 = sand.u32 %s170, 1
        %s1162 = smul.addr %s1161, 2
        %s1163 = scalar_lea.vmem [#allocation12], %s1162
        // Predicated region
        $region61: #{supcon_wsi_forward.2} parent=35 // pred_check
          %p1164 = pneg %p154
        $region62: #{supcon_wsi_forward.2} parent=35 // pred_check_branch
          %1166 = sbr.rel (%p1164) target = $region64
        $region63: #{supcon_wsi_forward.2} parent=35 // pred_region
          %s1168 = ssub.s32 64, 64
          %1169 = vsyncadd %s1155, %s1168
          %s1170 = smul.addr %s32, 64
          %s1171 = scalar_lea.hbm %s4, %s1170
          %s1173 = sshll.u32 %s1158, 4
          %s1174 = int_to_ptr.vmem [resolvable:$true] %s1173
          %1176 = dma.vmem_to_hbm [thread:$0]  %s1174, 64, %s1171, %s1155
        $region64: #{supcon_wsi_forward.2} parent=35 // pred_fallthru
          _
        // Predicated region
        $region65: #{supcon_wsi_forward.2} parent=35 // pred_check
          %p1177 = pneg %p180
        $region66: #{supcon_wsi_forward.2} parent=35 // pred_check_branch
          %1179 = sbr.rel (%p1177) target = $region68
        $region67: #{supcon_wsi_forward.2} parent=35 // pred_region
          %s1181 = ssub.s32 32, 32
          %1182 = vsyncadd %s1160, %s1181
          %s1183 = smul.addr %s32, 32
          %s1184 = scalar_lea.hbm %s5, %s1183
          %s1186 = sshll.u32 %s1163, 4
          %s1187 = int_to_ptr.vmem [resolvable:$true] %s1186
          %1189 = dma.vmem_to_hbm [thread:$0]  %s1187, 32, %s1184, %s1160
        $region68: #{supcon_wsi_forward.2} parent=35 // pred_fallthru
          _
      $region36: #{supcon_wsi_forward.2} parent=5 // pred_fallthru
        _
      %p1190 = scmp.le.s32.totalorder 2, %s23
      // Predicated region
      $region69: #{supcon_wsi_forward.2} parent=5 // pred_check
        %p1191 = pneg %p1190
      $region70: #{supcon_wsi_forward.2} parent=5 // pred_check_branch
        %1193 = sbr.rel (%p1191) target = $region72
      $region71: #{supcon_wsi_forward.2} parent=5 // pred_region
        %s1194 = ssub.s32 %s23, 2
        // Predicated region
        $region73: #{supcon_wsi_forward.2} parent=71 // pred_check
          %p1195 = pneg %p160
        $region74: #{supcon_wsi_forward.2} parent=71 // pred_check_branch
          %1197 = sbr.rel (%p1195) target = $region76
        $region75: #{supcon_wsi_forward.2} parent=71 // pred_region
          %s1198 = sand.u32 %s145, 1
          %s1199 = scalar_lea.sflag [#allocation5], %s1198
          %s1200 = sand.u32 %s145, 1
          %s1201 = smul.addr %s1200, 4
          %s1202 = scalar_lea.vmem [#allocation11], %s1201
          %1203 = dma.done %s1199, 64
        $region76: #{supcon_wsi_forward.2} parent=71 // pred_fallthru
          _
        // Predicated region
        $region77: #{supcon_wsi_forward.2} parent=71 // pred_check
          %p1204 = pneg %p186
        $region78: #{supcon_wsi_forward.2} parent=71 // pred_check_branch
          %1206 = sbr.rel (%p1204) target = $region80
        $region79: #{supcon_wsi_forward.2} parent=71 // pred_region
          %s1207 = sand.u32 %s171, 1
          %s1208 = scalar_lea.sflag [#allocation13], %s1207
          %s1209 = sand.u32 %s171, 1
          %s1210 = smul.addr %s1209, 2
          %s1211 = scalar_lea.vmem [#allocation12], %s1210
          %1212 = dma.done %s1208, 32
        $region80: #{supcon_wsi_forward.2} parent=71 // pred_fallthru
          _
      $region72: #{supcon_wsi_forward.2} parent=5 // pred_fallthru
        _
    $region6: #{supcon_wsi_forward.2} parent=1 // loop_footer
      %s27 = sadd.s32 1, %s23
    $region7: #{supcon_wsi_forward.2} parent=1 // loop_footer_branch
      %22 = sbr.rel target = $region3
    $region8: #{supcon_wsi_forward.2} parent=1 // loop_exit
      _
    %1213 = vsyncpa [#allocation4], 1
    %s1214 = scalar_lea.sflag [#allocation4], 1
    %1215 = vsyncpa %s1214, 1
    %1216 = vsyncpa [#allocation7], 1
    %1217 = vsyncpa [#allocation10], 1
    %1218 = vsyncpa [#allocation5], 1
    %s1219 = scalar_lea.sflag [#allocation5], 1
    %1220 = vsyncpa %s1219, 1
    %1221 = vsyncpa [#allocation13], 1
    %s1222 = scalar_lea.sflag [#allocation13], 1
    %1223 = vsyncpa %s1222, 1

// kernel: supcon_wsi_forward.3
$region0: #{supcon_wsi_forward.3}
  #allocation0 [shape = 'u32[]', space=smem, size = 0x4, offset = 0x4, fixed_abs, tag = 'smem constant byte address 0x4 - core index']
  #allocation1 [shape = 'u32[144,128]{1,0:T(1,128)}', space=vmem, size = 0x12000, scoped, tag = 'internal scratch']
  #allocation2 [shape = 'f32[2,128]{1,0:T(2,128)}', space=vmem, size = 0x400, scoped, tag = 'scratch operand']
  %s0 = inlined_call_operand.hbm [shape: bf16[2,8,128], index: 0, kind: input, shape index: {}]
  %s1 = inlined_call_operand.hbm [shape: f32[3,128], index: 1, kind: input, shape index: {}]
  %s2 = inlined_call_operand.hbm [shape: bf16[128,128], index: 2, kind: input, shape index: {}]
  %s3 = inlined_call_operand.hbm [shape: bf16[128,128], index: 3, kind: input, shape index: {}]
  %s4 = inlined_call_operand.hbm [shape: f32[1,128], index: 4, kind: input, shape index: {}]
  %s5 = inlined_call_operand.hbm [shape: f32[2,128], index: 5, kind: output, shape index: {}]
  %s6 = sld [smem:[#allocation0]]
  $region58: #{supcon_wsi_forward.3} parent=0
    _
  %s8 = ssub.s32 1, %s6
  %s9 = scalar_select 0, %s8, %s6
  $region1: #{supcon_wsi_forward.3} parent=0
    #allocation3 [shape = 'u8[4096]{0}', space=vmem, size = 0x1000, scoped, tag = 'input window, operand 0, single buffered']
    #allocation4 [shape = 's32[1]{0}', space=sflag, size = 0x4, scoped, tag = 'scoped memory for supcon_wsi_forward.3']
    #allocation5 [shape = 's32[1]{0}', space=sflag, size = 0x4, scoped, tag = 'scoped memory for supcon_wsi_forward.3']
    #allocation6 [shape = 'u8[2048]{0}', space=vmem, size = 0x800, scoped, tag = 'input window, operand 1, single buffered']
    #allocation7 [shape = 's32[1]{0}', space=sflag, size = 0x4, scoped, tag = 'scoped memory for supcon_wsi_forward.3']
    #allocation8 [shape = 'u8[32768]{0}', space=vmem, size = 0x8000, scoped, tag = 'input window, operand 2, single buffered']
    #allocation9 [shape = 'u8[32768]{0}', space=vmem, size = 0x8000, scoped, tag = 'input window, operand 3, single buffered']
    #allocation10 [shape = 's32[1]{0}', space=sflag, size = 0x4, scoped, tag = 'scoped memory for supcon_wsi_forward.3']
    #allocation11 [shape = 'u8[512]{0}', space=vmem, size = 0x400, scoped, tag = 'input window, operand 4, single buffered']
    #allocation12 [shape = 'u8[1024]{0}', space=vmem, size = 0x400, scoped, tag = 'output window, operand 0, single buffered']
    %10 = vsyncpa [#allocation4], 0
    %11 = vsyncpa [#allocation7], 0
    %12 = vsyncpa [#allocation10], 0
    %13 = vsyncpa [#allocation5], 0
    // Predicated region
    $region2: #{supcon_wsi_forward.3} parent=1 // pred_check
      _
    $region3: #{supcon_wsi_forward.3} parent=1 // pred_check_branch
      %15 = sbr.rel (0) target = $region5
    $region4: #{supcon_wsi_forward.3} parent=1 // pred_region
      %s17 = ssub.s32 128, 128
      %18 = vsyncadd [#allocation4], %s17
      %s19 = sshll.u32 [#allocation3], 4
      %s20 = int_to_ptr.vmem [resolvable:$true] %s19
      %25 = dma.hbm_to_vmem [thread:$0]  %s0, 128, %s20, [#allocation4], 64, 64, 4
    $region5: #{supcon_wsi_forward.3} parent=1 // pred_fallthru
      _
    // Predicated region
    $region6: #{supcon_wsi_forward.3} parent=1 // pred_check
      _
    $region7: #{supcon_wsi_forward.3} parent=1 // pred_check_branch
      %27 = sbr.rel (0) target = $region9
    $region8: #{supcon_wsi_forward.3} parent=1 // pred_region
      %s29 = ssub.s32 64, 64
      %30 = vsyncadd [#allocation7], %s29
      %s32 = sshll.u32 [#allocation6], 4
      %s33 = int_to_ptr.vmem [resolvable:$true] %s32
      %35 = dma.hbm_to_vmem [thread:$0]  %s1, 64, %s33, [#allocation7]
    $region9: #{supcon_wsi_forward.3} parent=1 // pred_fallthru
      _
    // Predicated region
    $region10: #{supcon_wsi_forward.3} parent=1 // pred_check
      _
    $region11: #{supcon_wsi_forward.3} parent=1 // pred_check_branch
      %37 = sbr.rel (0) target = $region13
    $region12: #{supcon_wsi_forward.3} parent=1 // pred_region
      %s39 = ssub.s32 1024, 1024
      %40 = vsyncadd [#allocation7], %s39
      %s41 = sshll.u32 [#allocation8], 4
      %s42 = int_to_ptr.vmem [resolvable:$true] %s41
      %47 = dma.hbm_to_vmem [thread:$0]  %s2, 1024, %s42, [#allocation7], 64, 64, 4
    $region13: #{supcon_wsi_forward.3} parent=1 // pred_fallthru
      _
    // Predicated region
    $region14: #{supcon_wsi_forward.3} parent=1 // pred_check
      _
    $region15: #{supcon_wsi_forward.3} parent=1 // pred_check_branch
      %49 = sbr.rel (0) target = $region17
    $region16: #{supcon_wsi_forward.3} parent=1 // pred_region
      %s51 = ssub.s32 1024, 1024
      %52 = vsyncadd [#allocation10], %s51
      %s53 = sshll.u32 [#allocation9], 4
      %s54 = int_to_ptr.vmem [resolvable:$true] %s53
      %59 = dma.hbm_to_vmem [thread:$0]  %s3, 1024, %s54, [#allocation10], 64, 64, 4
    $region17: #{supcon_wsi_forward.3} parent=1 // pred_fallthru
      _
    // Predicated region
    $region18: #{supcon_wsi_forward.3} parent=1 // pred_check
      _
    $region19: #{supcon_wsi_forward.3} parent=1 // pred_check_branch
      %61 = sbr.rel (0) target = $region21
    $region20: #{supcon_wsi_forward.3} parent=1 // pred_region
      %s63 = ssub.s32 16, 16
      %64 = vsyncadd [#allocation10], %s63
      %s66 = sshll.u32 [#allocation11], 4
      %s67 = int_to_ptr.vmem [resolvable:$true] %s66
      %69 = dma.hbm_to_vmem [thread:$0]  %s4, 16, %s67, [#allocation10]
    $region21: #{supcon_wsi_forward.3} parent=1 // pred_fallthru
      _
    // Predicated region
    $region22: #{supcon_wsi_forward.3} parent=1 // pred_check
      _
    $region23: #{supcon_wsi_forward.3} parent=1 // pred_check_branch
      %71 = sbr.rel (0) target = $region25
    $region24: #{supcon_wsi_forward.3} parent=1 // pred_region
      %72 = dma.done [#allocation4], 128
    $region25: #{supcon_wsi_forward.3} parent=1 // pred_fallthru
      _
    // Predicated region
    $region26: #{supcon_wsi_forward.3} parent=1 // pred_check
      _
    $region27: #{supcon_wsi_forward.3} parent=1 // pred_check_branch
      %74 = sbr.rel (0) target = $region29
    $region28: #{supcon_wsi_forward.3} parent=1 // pred_region
      %75 = dma.done [#allocation7], 64
    $region29: #{supcon_wsi_forward.3} parent=1 // pred_fallthru
      _
    // Predicated region
    $region30: #{supcon_wsi_forward.3} parent=1 // pred_check
      _
    $region31: #{supcon_wsi_forward.3} parent=1 // pred_check_branch
      %77 = sbr.rel (0) target = $region33
    $region32: #{supcon_wsi_forward.3} parent=1 // pred_region
      %78 = dma.done [#allocation7], 1024
    $region33: #{supcon_wsi_forward.3} parent=1 // pred_fallthru
      _
    // Predicated region
    $region34: #{supcon_wsi_forward.3} parent=1 // pred_check
      _
    $region35: #{supcon_wsi_forward.3} parent=1 // pred_check_branch
      %80 = sbr.rel (0) target = $region37
    $region36: #{supcon_wsi_forward.3} parent=1 // pred_region
      %81 = dma.done [#allocation10], 1024
    $region37: #{supcon_wsi_forward.3} parent=1 // pred_fallthru
      _
    // Predicated region
    $region38: #{supcon_wsi_forward.3} parent=1 // pred_check
      _
    $region39: #{supcon_wsi_forward.3} parent=1 // pred_check_branch
      %83 = sbr.rel (0) target = $region41
    $region40: #{supcon_wsi_forward.3} parent=1 // pred_region
      %84 = dma.done [#allocation10], 16
    $region41: #{supcon_wsi_forward.3} parent=1 // pred_fallthru
      _
    %p86 = scmp.eq.s32.totalorder 0, 0
    // Predicated region
    $region42: #{supcon_wsi_forward.3} parent=1 // pred_check
      %p87 = pneg %p86
    $region43: #{supcon_wsi_forward.3} parent=1 // pred_check_branch
      %89 = sbr.rel (%p87) target = $region45
    $region44: #{supcon_wsi_forward.3} parent=1 // pred_region
      %90 = vst [vmem:[#allocation2] sm:$0x3] 0.0
    $region45: #{supcon_wsi_forward.3} parent=1 // pred_fallthru
      _
    %v91 = vld [vmem:[#allocation6] sm:$0x1]
    %v92 = vld [vmem:[#allocation6 + $0x1] sm:$0x1]
    %v93 = vld [vmem:[#allocation3] sm:$0xf]
    %v94 = vld [vmem:[#allocation3 + $0x4] sm:$0xf]
    %v95 = vunpack.c.l.bf16 %v93
    %v96 = vunpack.c.l.bf16 %v94
    %v97 = vlaneseq
    %v98 = vshrl.u32 %v97, 7
    %v99 = vsub.s32 0, %v98
    %v100 = vrot.slane %v91, %v99
    %v101 = vmul.f32 %v95, %v100
    %v102 = vmul.f32 %v96, %v100
    %v103 = vlaneseq
    %v104 = vshrl.u32 %v103, 7
    %v105 = vsub.s32 0, %v104
    %v106 = vrot.slane %v92, %v105
    %v107 = vadd.f32 %v101, %v106
    %v108 = vadd.f32 %v102, %v106
    %v109 = vmax.f32 %v107, 0.0
    %v110 = vmax.f32 %v108, 0.0
    %v111 = vld [vmem:[#allocation2] sm:$0x3]
    %v112 = vrot.slane %v109, 4
    %v113 = vadd.f32 %v109, %v112
    %v114 = vrot.slane %v113, 2
    %v115 = vadd.f32 %v113, %v114
    %v116 = vrot.slane %v115, 1
    %v117 = vadd.f32 %v115, %v116
    %v118 = vrot.slane %v110, 4
    %v119 = vadd.f32 %v110, %v118
    %v120 = vrot.slane %v119, 2
    %v121 = vadd.f32 %v119, %v120
    %v122 = vrot.slane %v121, 1
    %v123 = vadd.f32 %v121, %v122
    %vm126 = vcmask 1041409
    %v127 = vsel %vm126, %v123, %v117
    %v129 = vadd.f32 %v111, %v127
    %130 = vst [vmem:[#allocation2] sm:$0x3] %v129
    // Predicated region
    $region46: #{supcon_wsi_forward.3} parent=1 // pred_check
      %p131 = pneg %p86
    $region47: #{supcon_wsi_forward.3} parent=1 // pred_check_branch
      %133 = sbr.rel (%p131) target = $region49
    $region48: #{supcon_wsi_forward.3} parent=1 // pred_region
      %v134 = vld [vmem:[#allocation2] sm:$0x3]
      %v135 = vmul.f32 %v134, 0.125
      %v136 = vld [vmem:[#allocation6 + $0x2] sm:$0x1]
      %v137 = vpack.c.bf16 %v135, %v135
      %v138 = vld [vmem:[#allocation8] sm:$0xf]
      %v139 = vld [vmem:[#allocation8 + $0x4] sm:$0xf]
      %v140 = vld [vmem:[#allocation8 + $0x8] sm:$0xf]
      %v141 = vld [vmem:[#allocation8 + $0xc] sm:$0xf]
      %v142 = vld [vmem:[#allocation8 + $0x10] sm:$0xf]
      %v143 = vld [vmem:[#allocation8 + $0x14] sm:$0xf]
      %v144 = vld [vmem:[#allocation8 + $0x18] sm:$0xf]
      %v145 = vld [vmem:[#allocation8 + $0x1c] sm:$0xf]
      %v146 = vld [vmem:[#allocation8 + $0x20] sm:$0xf]
      %v147 = vld [vmem:[#allocation8 + $0x24] sm:$0xf]
      %v148 = vld [vmem:[#allocation8 + $0x28] sm:$0xf]
      %v149 = vld [vmem:[#allocation8 + $0x2c] sm:$0xf]
      %v150 = vld [vmem:[#allocation8 + $0x30] sm:$0xf]
      %v151 = vld [vmem:[#allocation8 + $0x34] sm:$0xf]
      %v152 = vld [vmem:[#allocation8 + $0x38] sm:$0xf]
      %v153 = vld [vmem:[#allocation8 + $0x3c] sm:$0xf]
      %v154 = vlaneseq
      %v155 = vshrl.u32 %v154, 7
      %v156 = vsub.s32 0, %v155
      %v157 = vrot.slane %v136, %v156
      %v174 = vunpack.c.l.b16 %v138
      %v175 = vunpack.c.l.b16 %v139
      %v176 = vunpack.c.l.b16 %v140
      %v177 = vunpack.c.l.b16 %v141
      %v178 = vunpack.c.l.b16 %v142
      %v179 = vunpack.c.l.b16 %v143
      %v180 = vunpack.c.l.b16 %v144
      %v181 = vunpack.c.l.b16 %v145
      %v182 = vunpack.c.l.b16 %v146
      %v183 = vunpack.c.l.b16 %v147
      %v184 = vunpack.c.l.b16 %v148
      %v185 = vunpack.c.l.b16 %v149
      %v186 = vunpack.c.l.b16 %v150
      %v187 = vunpack.c.l.b16 %v151
      %v188 = vunpack.c.l.b16 %v152
      %v189 = vunpack.c.l.b16 %v153
      %v190 = vpack.c.b16 %v175, %v174
      %v191 = vpack.c.b16 %v177, %v176
      %v192 = vpack.c.b16 %v179, %v178
      %v193 = vpack.c.b16 %v181, %v180
      %v194 = vpack.c.b16 %v183, %v182
      %v195 = vpack.c.b16 %v185, %v184
      %v196 = vpack.c.b16 %v187, %v186
      %v197 = vpack.c.b16 %v189, %v188
      %206 = vmatprep.subr.bf16.mxu0 0
      %207 = vmatpush1.bf16.msra.mxu0 %v190
      %208 = vmatprep.subr.bf16.mxu0 0
      %209 = vmatpush1.bf16.msra.mxu0 %v191
      %210 = vmatprep.subr.bf16.mxu0 0
      %211 = vmatpush1.bf16.msra.mxu0 %v192
      %212 = vmatprep.subr.bf16.mxu0 0
      %213 = vmatpush1.bf16.msra.mxu0 %v193
      %214 = vmatprep.subr.bf16.mxu0 0
      %215 = vmatpush1.bf16.msra.mxu0 %v194
      %216 = vmatprep.subr.bf16.mxu0 0
      %217 = vmatpush1.bf16.msra.mxu0 %v195
      %218 = vmatprep.subr.bf16.mxu0 0
      %219 = vmatpush1.bf16.msra.mxu0 %v196
      %220 = vmatprep.subr.bf16.mxu0 0
      %221 = vmatpush1.bf16.msra.mxu0 %v197
      %222 = vmatprep.subr.bf16.mxu0 0
      %223 = vmatpush1.bf16.msra.mxu0 0
      %224 = vmatprep.subr.bf16.mxu0 0
      %225 = vmatpush1.bf16.msra.mxu0 0
      %226 = vmatprep.subr.bf16.mxu0 0
      %227 = vmatpush1.bf16.msra.mxu0 0
      %228 = vmatprep.subr.bf16.mxu0 0
      %229 = vmatpush1.bf16.msra.mxu0 0
      %230 = vmatprep.subr.bf16.mxu0 0
      %231 = vmatpush1.bf16.msra.mxu0 0
      %232 = vmatprep.subr.bf16.mxu0 0
      %233 = vmatpush1.bf16.msra.mxu0 0
      %234 = vmatprep.subr.bf16.mxu0 0
      %235 = vmatpush1.bf16.msra.mxu0 0
      %236 = vmatprep.subr.bf16.mxu0 0
      %237 = vmatpush1.bf16.msra.mxu0 0
      %238 = vmatprep.mubr.bf16.mxu0 0
      %239 = vmatmul.mubr.bf16.gmra.mrb[0].mxu0 %v137
      %v240 = vpop.f32.mrb[0].mxu0
      %v241 = vadd.f32 %v157, %v240
      %v242 = vpop.f32.mrb[0].mxu0
      %v243 = vpop.f32.mrb[0].mxu0
      %v244 = vpop.f32.mrb[0].mxu0
      %245 = vdwg.mxu0
      %v246 = vmax.f32 %v241, 0.0
      %v247 = vpack.c.bf16 %v246, %v246
      %v248 = vld [vmem:[#allocation9] sm:$0xf]
      %v249 = vld [vmem:[#allocation9 + $0x4] sm:$0xf]
      %v250 = vld [vmem:[#allocation9 + $0x8] sm:$0xf]
      %v251 = vld [vmem:[#allocation9 + $0xc] sm:$0xf]
      %v252 = vld [vmem:[#allocation9 + $0x10] sm:$0xf]
      %v253 = vld [vmem:[#allocation9 + $0x14] sm:$0xf]
      %v254 = vld [vmem:[#allocation9 + $0x18] sm:$0xf]
      %v255 = vld [vmem:[#allocation9 + $0x1c] sm:$0xf]
      %v256 = vld [vmem:[#allocation9 + $0x20] sm:$0xf]
      %v257 = vld [vmem:[#allocation9 + $0x24] sm:$0xf]
      %v258 = vld [vmem:[#allocation9 + $0x28] sm:$0xf]
      %v259 = vld [vmem:[#allocation9 + $0x2c] sm:$0xf]
      %v260 = vld [vmem:[#allocation9 + $0x30] sm:$0xf]
      %v261 = vld [vmem:[#allocation9 + $0x34] sm:$0xf]
      %v262 = vld [vmem:[#allocation9 + $0x38] sm:$0xf]
      %v263 = vld [vmem:[#allocation9 + $0x3c] sm:$0xf]
      %v264 = vld [vmem:[#allocation11] sm:$0x1]
      %v266 = vlaneseq
      %v267 = vshrl.u32 %v266, 7
      %v268 = vsub.s32 0, %v267
      %v269 = vrot.slane %v264, %v268
      %v287 = vunpack.c.l.b16 %v248
      %v288 = vunpack.c.l.b16 %v249
      %v289 = vunpack.c.l.b16 %v250
      %v290 = vunpack.c.l.b16 %v251
      %v291 = vunpack.c.l.b16 %v252
      %v292 = vunpack.c.l.b16 %v253
      %v293 = vunpack.c.l.b16 %v254
      %v294 = vunpack.c.l.b16 %v255
      %v295 = vunpack.c.l.b16 %v256
      %v296 = vunpack.c.l.b16 %v257
      %v297 = vunpack.c.l.b16 %v258
      %v298 = vunpack.c.l.b16 %v259
      %v299 = vunpack.c.l.b16 %v260
      %v300 = vunpack.c.l.b16 %v261
      %v301 = vunpack.c.l.b16 %v262
      %v302 = vunpack.c.l.b16 %v263
      %v303 = vpack.c.b16 %v288, %v287
      %v304 = vpack.c.b16 %v290, %v289
      %v305 = vpack.c.b16 %v292, %v291
      %v306 = vpack.c.b16 %v294, %v293
      %v307 = vpack.c.b16 %v296, %v295
      %v308 = vpack.c.b16 %v298, %v297
      %v309 = vpack.c.b16 %v300, %v299
      %v310 = vpack.c.b16 %v302, %v301
      %319 = vmatprep.subr.bf16.mxu0 0
      %320 = vmatpush1.bf16.msra.mxu0 %v303
      %321 = vmatprep.subr.bf16.mxu0 0
      %322 = vmatpush1.bf16.msra.mxu0 %v304
      %323 = vmatprep.subr.bf16.mxu0 0
      %324 = vmatpush1.bf16.msra.mxu0 %v305
      %325 = vmatprep.subr.bf16.mxu0 0
      %326 = vmatpush1.bf16.msra.mxu0 %v306
      %327 = vmatprep.subr.bf16.mxu0 0
      %328 = vmatpush1.bf16.msra.mxu0 %v307
      %329 = vmatprep.subr.bf16.mxu0 0
      %330 = vmatpush1.bf16.msra.mxu0 %v308
      %331 = vmatprep.subr.bf16.mxu0 0
      %332 = vmatpush1.bf16.msra.mxu0 %v309
      %333 = vmatprep.subr.bf16.mxu0 0
      %334 = vmatpush1.bf16.msra.mxu0 %v310
      %335 = vmatprep.subr.bf16.mxu0 0
      %336 = vmatpush1.bf16.msra.mxu0 0
      %337 = vmatprep.subr.bf16.mxu0 0
      %338 = vmatpush1.bf16.msra.mxu0 0
      %339 = vmatprep.subr.bf16.mxu0 0
      %340 = vmatpush1.bf16.msra.mxu0 0
      %341 = vmatprep.subr.bf16.mxu0 0
      %342 = vmatpush1.bf16.msra.mxu0 0
      %343 = vmatprep.subr.bf16.mxu0 0
      %344 = vmatpush1.bf16.msra.mxu0 0
      %345 = vmatprep.subr.bf16.mxu0 0
      %346 = vmatpush1.bf16.msra.mxu0 0
      %347 = vmatprep.subr.bf16.mxu0 0
      %348 = vmatpush1.bf16.msra.mxu0 0
      %349 = vmatprep.subr.bf16.mxu0 0
      %350 = vmatpush1.bf16.msra.mxu0 0
      %351 = vmatprep.mubr.bf16.mxu0 0
      %352 = vmatmul.mubr.bf16.gmra.mrb[0].mxu0 %v247
      %v353 = vpop.f32.mrb[0].mxu0
      %v354 = vadd.f32 %v269, %v353
      %v355 = vpop.f32.mrb[0].mxu0
      %v356 = vpop.f32.mrb[0].mxu0
      %v357 = vpop.f32.mrb[0].mxu0
      %358 = vdwg.mxu0
      %v359 = vmul.f32 %v354, %v354
      %vm360 = vcmask 1041408
      %v361 = vsel %vm360, %v359, 0.0
      %362 = vadd.xlane.f32.xlu0 %v361
      %v363 = vpop.xlane.xlu0 %362
      %v364 = vmax.f32 %v363, 1e-24
      %v365 = vrsqrt.pop %v364
      %v366 = vmul.f32 %v354, %v365
      %367 = vst [vmem:[#allocation12] sm:$0x3] %v366
    $region49: #{supcon_wsi_forward.3} parent=1 // pred_fallthru
      _
    // Predicated region
    $region50: #{supcon_wsi_forward.3} parent=1 // pred_check
      _
    $region51: #{supcon_wsi_forward.3} parent=1 // pred_check_branch
      %369 = sbr.rel (0) target = $region53
    $region52: #{supcon_wsi_forward.3} parent=1 // pred_region
      %s371 = ssub.s32 32, 32
      %372 = vsyncadd [#allocation5], %s371
      %s374 = sshll.u32 [#allocation12], 4
      %s375 = int_to_ptr.vmem [resolvable:$true] %s374
      %377 = dma.vmem_to_hbm [thread:$0]  %s375, 32, %s5, [#allocation5]
    $region53: #{supcon_wsi_forward.3} parent=1 // pred_fallthru
      _
    // Predicated region
    $region54: #{supcon_wsi_forward.3} parent=1 // pred_check
      _
    $region55: #{supcon_wsi_forward.3} parent=1 // pred_check_branch
      %379 = sbr.rel (0) target = $region57
    $region56: #{supcon_wsi_forward.3} parent=1 // pred_region
      %380 = dma.done [#allocation5], 32
    $region57: #{supcon_wsi_forward.3} parent=1 // pred_fallthru
      _
    %381 = vsyncpa [#allocation4], 1
    %382 = vsyncpa [#allocation7], 1
    %383 = vsyncpa [#allocation10], 1
    %384 = vsyncpa [#allocation5], 1

</llo_original>
